<compile_context>
chip_gen: v6e
topology: v6e:2x2x1
jax: 0.10.0
libtpu: 0.0.40
codegen_flags: <defaults>
</compile_context>

<pallas_src>
import functools

import jax
import jax.numpy as jnp
from jax import lax
from jax.experimental import pallas as pl
from jax.experimental.pallas import tpu as pltpu

LANE = 128  # feature (lane) axis padding -> dense vregs and unmasked stores


def _round_up(x, m):
    return (x + m - 1) // m * m


def _pad2(a, rows, cols):
    a = jnp.asarray(a, jnp.float32)
    return jnp.pad(a, ((0, rows - a.shape[0]), (0, cols - a.shape[1])))


# ----------------------------------------------------------------------------
# Fused forward kernel.  grid = (layers_mp, edge_tiles); both axes sequential
# ("arbitrary") because node state / aggregator are carried in VMEM scratch.
# ----------------------------------------------------------------------------
def _gine_gnn_kernel(src_ref, dst_ref, xraw_ref, eraw_ref,
                     nw_ref, nb_ref, ew_ref, eb_ref,
                     gw1_ref, gb1_ref, gw2_ref, gb2_ref,
                     hw_ref, hb_ref,
                     o_ref,
                     x_state, agg, *, eps):
    l = pl.program_id(0)
    t = pl.program_id(1)
    n_layers = pl.num_programs(0)
    n_tiles = pl.num_programs(1)

    n_pad = x_state.shape[0]
    te = src_ref.shape[0]

    # ---- FeatureEncoder node branch: once, at the very first grid step ----
    @pl.when((l == 0) & (t == 0))
    def _():
        x_state[...] = (jnp.dot(xraw_ref[...], nw_ref[...],
                                preferred_element_type=jnp.float32)
                        + nb_ref[...])

    # ---- zero the aggregation accumulator at the start of every layer ----
    @pl.when(t == 0)
    def _():
        agg[...] = jnp.zeros_like(agg)

    # ---- per edge-tile: encode edges, gather x_src, message, scatter-add ----
    # Edge encoder re-applied per tile & layer: identical values (edge_attr is
    # never updated by GINEConvLayer), negligible FLOPs vs. the aggregation.
    e_tile = (jnp.dot(eraw_ref[...], ew_ref[...],
                      preferred_element_type=jnp.float32)
              + eb_ref[...])                                        # (TE, D) f32

    x_bf = x_state[...].astype(jnp.bfloat16)                        # (N, D) bf16

    # Exact 0/1 gather / scatter operators built in-register per tile (never
    # live across layers).  Padded edges carry src/dst = -1 -> never match.
    src_col = src_ref[...]                                          # (TE, 1) i32
    dst_row = dst_ref[...]                                          # (1, TE) i32
    src_oh = jnp.where(
        lax.broadcasted_iota(jnp.int32, (te, n_pad), 1) == src_col,
        1.0, 0.0).astype(jnp.bfloat16)                              # (TE, N)
    dst_oh = jnp.where(
        lax.broadcasted_iota(jnp.int32, (n_pad, te), 0) == dst_row,
        1.0, 0.0).astype(jnp.bfloat16)                              # (N, TE)

    x_src = jnp.dot(src_oh, x_bf, preferred_element_type=jnp.float32)   # (TE,D)
    msg = jnp.maximum(x_src + e_tile, 0.0).astype(jnp.bfloat16)
    agg[...] += jnp.dot(dst_oh, msg, preferred_element_type=jnp.float32)  # (N,D)

    # ---- layer epilogue after the last edge tile: GIN MLP, ReLU, residual ----
    @pl.when(t == n_tiles - 1)
    def _():
        x = x_state[...]
        # NOTE: eps is a *static* Python float (functools.partial); the branch
        # below is a trace-time specialisation, valid only for static eps.
        if eps == 0.0:
            h = x + agg[...]
        else:
            h = (1.0 + eps) * x + agg[...]
        h = jnp.maximum(
            jnp.dot(h.astype(jnp.bfloat16), gw1_ref[...],
                    preferred_element_type=jnp.float32) + gb1_ref[...], 0.0)
        h = (jnp.dot(h.astype(jnp.bfloat16), gw2_ref[...],
                     preferred_element_type=jnp.float32) + gb2_ref[...])
        # GINEConvLayer epilogue: ReLU -> dropout(identity, eval) -> residual.
        x_state[...] = x + jnp.maximum(h, 0.0)

    # ---- post_mp node head: once, at the very last grid step ----
    @pl.when((l == n_layers - 1) & (t == n_tiles - 1))
    def _():
        o_ref[...] = (jnp.dot(x_state[...].astype(jnp.bfloat16), hw_ref[...],
                              preferred_element_type=jnp.float32)
                      + hb_ref[...]).astype(o_ref.dtype)


# ----------------------------------------------------------------------------
# Parameter init (deterministic, synthetic — no checkpoint loading)
# ----------------------------------------------------------------------------
def init_params(key, dim_node_raw, dim_edge_raw, dim_inner, dim_out, layers_mp):
    def lin_init(k, fan_in, fan_out):
        kw, kb = jax.random.split(k)
        scale = 1.0 / jnp.sqrt(jnp.float32(fan_in))
        w = jax.random.uniform(kw, (fan_in, fan_out), jnp.float32, -scale, scale)
        b = jax.random.uniform(kb, (fan_out,), jnp.float32, -scale, scale)
        return w, b

    keys = jax.random.split(key, 3 + 2 * layers_mp)
    params = {}
    params['node_enc_w'], params['node_enc_b'] = lin_init(keys[0], dim_node_raw, dim_inner)
    params['edge_enc_w'], params['edge_enc_b'] = lin_init(keys[1], dim_edge_raw, dim_inner)
    params['head_w'], params['head_b'] = lin_init(keys[2], dim_inner, dim_out)
    params['gnn_layers'] = []
    for i in range(layers_mp):
        w1, b1 = lin_init(keys[3 + 2 * i], dim_inner, dim_inner)
        w2, b2 = lin_init(keys[4 + 2 * i], dim_inner, dim_inner)
        params['gnn_layers'].append({'w1': w1, 'b1': b1, 'w2': w2, 'b2': b2})
    return params


# ----------------------------------------------------------------------------
# CustomGNN forward (single fused pallas_call)
# ----------------------------------------------------------------------------
def custom_gnn_forward(params, x_raw, edge_index, edge_attr_raw, *,
                       eps=0.0, edge_tile=None):
    n_nodes, d_node_raw = x_raw.shape
    n_edges, d_edge_raw = edge_attr_raw.shape
    dim_inner = params['node_enc_w'].shape[1]
    dim_out = params['head_w'].shape[1]
    n_layers = len(params['gnn_layers'])
    assert max(d_node_raw, d_edge_raw, dim_inner, dim_out) <= LANE

    if edge_tile is None:
        # Larger edge tiles fill the 256-wide MXU better on v6e/v7x; the
        # (N, TE)/(TE, N) one-hots stay bounded regardless of total E.
        edge_tile = 256 if n_edges >= 1024 else 128
    assert edge_tile % LANE == 0

    n_pad = _round_up(n_nodes, 8)
    e_pad = _round_up(max(n_edges, 1), edge_tile)
    n_tiles = e_pad // edge_tile
    grid = (n_layers, n_tiles)

    # --- bf16 MXU operands (zero padding stays exact), f32 biases ---
    xp = _pad2(x_raw, n_pad, LANE).astype(jnp.bfloat16)
    ep = _pad2(edge_attr_raw, e_pad, LANE).astype(jnp.bfloat16)
    nw = _pad2(params['node_enc_w'], LANE, LANE).astype(jnp.bfloat16)
    nb = _pad2(params['node_enc_b'].reshape(1, -1), 1, LANE)
    ew = _pad2(params['edge_enc_w'], LANE, LANE).astype(jnp.bfloat16)
    eb = _pad2(params['edge_enc_b'].reshape(1, -1), 1, LANE)
    gw1 = jnp.stack([_pad2(lp['w1'], LANE, LANE)
                     for lp in params['gnn_layers']]).astype(jnp.bfloat16)
    gb1 = jnp.stack([_pad2(lp['b1'].reshape(1, -1), 1, LANE)
                     for lp in params['gnn_layers']])
    gw2 = jnp.stack([_pad2(lp['w2'], LANE, LANE)
                     for lp in params['gnn_layers']]).astype(jnp.bfloat16)
    gb2 = jnp.stack([_pad2(lp['b2'].reshape(1, -1), 1, LANE)
                     for lp in params['gnn_layers']])
    hw = _pad2(params['head_w'], LANE, LANE).astype(jnp.bfloat16)
    hb = _pad2(params['head_b'].reshape(1, -1), 1, LANE)

    # Edge indices, compact in HBM, laid out exactly as each one-hot needs
    # them (src as an (E,1) column, dst as a (1,E) row).  Padded edges get -1
    # so the one-hot compare drops them.
    # TODO(synk): move indices to SMEM scalar prefetch once the dense one-hot
    #   matmul is replaced by a true index-driven gather/segment-sum path.
    src_col = jnp.full((e_pad, 1), -1, jnp.int32).at[:n_edges, 0].set(
        edge_index[0].astype(jnp.int32))
    dst_row = jnp.full((1, e_pad), -1, jnp.int32).at[0, :n_edges].set(
        edge_index[1].astype(jnp.int32))

    # --- advisory cost estimate (tiled / bf16 math) ---
    D = LANE
    flops = (2 * n_pad * D * D                                   # node encoder
             + n_layers * (2 * e_pad * D * D                     # edge encoder
                           + 4 * e_pad * n_pad * D               # gather+scatter
                           + 4 * n_pad * D * D)                  # GIN 2-layer MLP
             + 2 * n_pad * D * D)                                # head
    bytes_accessed = int(
        n_layers * (e_pad * D * 2 + e_pad * 4 + e_pad * 4)       # edge tiles + idx
        + xp.size * 2
        + (nw.size + ew.size + gw1.size + gw2.size + hw.size) * 2
        + (nb.size + eb.size + gb1.size + gb2.size + hb.size) * 4
        + n_pad * D * 2)                                         # bf16 output

    # --- per-step VMEM working set -> scoped limit (v5e default is 16 MiB,
    #     v7x physical is 64 MiB: stay within [32, 56] MiB) ---
    vmem_need = (
        2 * (edge_tile * D * 2            # e_raw tile (bf16, double-buffered)
             + n_pad * D * 2              # x_raw (bf16)
             + 2 * edge_tile * D * 4      # index tiles (lane-padded int32)
             + 6 * D * D * 2              # weight blocks (bf16)
             + 5 * D * 4                  # bias blocks (f32)
             + n_pad * D * 2)             # output block (bf16)
        + 2 * n_pad * D * 4               # x_state + agg scratch (f32)
        + 2 * edge_tile * n_pad * 2       # live one-hots (bf16)
        + 4 * (edge_tile + n_pad) * D * 4)  # f32 temporaries headroom
    vmem_limit = int(min(max(4 * vmem_need, 32 << 20), 56 << 20))

    kernel = functools.partial(_gine_gnn_kernel, eps=eps)
    out_pad = pl.pallas_call(
        kernel,
        out_shape=jax.ShapeDtypeStruct((n_pad, LANE), jnp.bfloat16),
        grid_spec=pltpu.PrefetchScalarGridSpec(
            num_scalar_prefetch=0,
            grid=grid,
            in_specs=[
                pl.BlockSpec((edge_tile, 1), lambda l, t: (t, 0)),        # src
                pl.BlockSpec((1, edge_tile), lambda l, t: (0, t)),        # dst
                pl.BlockSpec((n_pad, LANE), lambda l, t: (0, 0)),         # x_raw
                pl.BlockSpec((edge_tile, LANE), lambda l, t: (t, 0)),     # e_raw
                pl.BlockSpec((LANE, LANE), lambda l, t: (0, 0)),          # nw
                pl.BlockSpec((1, LANE), lambda l, t: (0, 0)),             # nb
                pl.BlockSpec((LANE, LANE), lambda l, t: (0, 0)),          # ew
                pl.BlockSpec((1, LANE), lambda l, t: (0, 0)),             # eb
                pl.BlockSpec((None, LANE, LANE), lambda l, t: (l, 0, 0)),  # gw1[l]
                pl.BlockSpec((None, 1, LANE), lambda l, t: (l, 0, 0)),     # gb1[l]
                pl.BlockSpec((None, LANE, LANE), lambda l, t: (l, 0, 0)),  # gw2[l]
                pl.BlockSpec((None, 1, LANE), lambda l, t: (l, 0, 0)),     # gb2[l]
                pl.BlockSpec((LANE, LANE), lambda l, t: (0, 0)),          # hw
                pl.BlockSpec((1, LANE), lambda l, t: (0, 0)),             # hb
            ],
            out_specs=pl.BlockSpec((n_pad, LANE), lambda l, t: (0, 0)),
            scratch_shapes=[pltpu.VMEM((n_pad, LANE), jnp.float32),   # x_state
                            pltpu.VMEM((n_pad, LANE), jnp.float32)],  # agg
        ),
        compiler_params=pltpu.CompilerParams(
            dimension_semantics=("arbitrary", "arbitrary"),
            vmem_limit_bytes=vmem_limit),
        cost_estimate=pl.CostEstimate(flops=flops, transcendentals=0,
                                      bytes_accessed=bytes_accessed),
    )(src_col, dst_row, xp, ep, nw, nb, ew, eb, gw1, gb1, gw2, gb2, hw, hb)

    return out_pad[:n_nodes, :dim_out].astype(jnp.float32)


# ----------------------------------------------------------------------------
# Pure-JAX reference (same math, f32, XLA segment_sum) for a sanity check.
# ----------------------------------------------------------------------------
def reference_forward(params, x_raw, edge_index, edge_attr_raw, *, eps=0.0):
    x = x_raw @ params['node_enc_w'] + params['node_enc_b']
    e = edge_attr_raw @ params['edge_enc_w'] + params['edge_enc_b']
    src, dst = edge_index[0], edge_index[1]
    for lp in params['gnn_layers']:
        msg = jnp.maximum(x[src] + e, 0.0)
        agg = jax.ops.segment_sum(msg, dst, num_segments=x.shape[0])
        h = (1.0 + eps) * x + agg
        h = jnp.maximum(h @ lp['w1'] + lp['b1'], 0.0)
        h = h @ lp['w2'] + lp['b2']
        x = x + jnp.maximum(h, 0.0)
    return x @ params['head_w'] + params['head_b']


if __name__ == "__main__":
    # Small, deterministic example consistent with the module's batch semantics.
    N_NODES, N_EDGES = 16, 32
    DIM_NODE_RAW, DIM_EDGE_RAW = 8, 8
    DIM_INNER, DIM_OUT = 32, 8
    LAYERS_MP = 2

    key = jax.random.PRNGKey(0)
    k_x, k_e, k_src, k_dst, k_params = jax.random.split(key, 5)

    x_raw = jax.random.normal(k_x, (N_NODES, DIM_NODE_RAW), jnp.float32)
    edge_attr_raw = jax.random.normal(k_e, (N_EDGES, DIM_EDGE_RAW), jnp.float32)
    edge_index = jnp.stack([
        jax.random.randint(k_src, (N_EDGES,), 0, N_NODES),
        jax.random.randint(k_dst, (N_EDGES,), 0, N_NODES),
    ], axis=0)  # [2, E]

    params = init_params(k_params, DIM_NODE_RAW, DIM_EDGE_RAW,
                         DIM_INNER, DIM_OUT, LAYERS_MP)

    out = custom_gnn_forward(params, x_raw, edge_index, edge_attr_raw)
    out = jax.block_until_ready(out)
    assert out.shape == (N_NODES, DIM_OUT)
    assert bool(jnp.all(jnp.isfinite(out)))

    ref = jax.block_until_ready(
        reference_forward(params, x_raw, edge_index, edge_attr_raw))
    # bf16 MXU operands (f32 accumulation) -> small deviation vs. all-f32 ref.
    max_err = float(jnp.max(jnp.abs(out - ref)))
    assert jnp.allclose(out, ref, atol=5e-2, rtol=5e-2), max_err

    print("KERNEL_OK")
</pallas_src>

<mosaic_0001>
module attributes {stable_mosaic.version = 11 : i64} {
  func.func @_gine_gnn_kernel(%arg0: i32, %arg1: i32, %arg2: memref<128x1xi32, #tpu.memory_space<vmem>>, %arg3: memref<1x128xi32, #tpu.memory_space<vmem>>, %arg4: memref<16x128xbf16, #tpu.memory_space<vmem>>, %arg5: memref<128x128xbf16, #tpu.memory_space<vmem>>, %arg6: memref<128x128xbf16, #tpu.memory_space<vmem>>, %arg7: memref<1x128xf32, #tpu.memory_space<vmem>>, %arg8: memref<128x128xbf16, #tpu.memory_space<vmem>>, %arg9: memref<1x128xf32, #tpu.memory_space<vmem>>, %arg10: memref<1x128x128xbf16, #tpu.memory_space<vmem>>, %arg11: memref<1x1x128xf32, #tpu.memory_space<vmem>>, %arg12: memref<1x128x128xbf16, #tpu.memory_space<vmem>>, %arg13: memref<1x1x128xf32, #tpu.memory_space<vmem>>, %arg14: memref<128x128xbf16, #tpu.memory_space<vmem>>, %arg15: memref<1x128xf32, #tpu.memory_space<vmem>>, %arg16: memref<16x128xbf16, #tpu.memory_space<vmem>>, %arg17: memref<16x128xf32, #tpu.memory_space<vmem>>, %arg18: memref<16x128xf32, #tpu.memory_space<vmem>>) attributes {dimension_semantics = [#tpu.dimension_semantics<arbitrary>, #tpu.dimension_semantics<arbitrary>], iteration_bounds = array<i64: 2, 1>, scalar_prefetch = 0 : i64, scratch_operands = 2 : i64, tpu.core_type = #tpu.core_type<tc>, window_params = [{transform_indices = @transform_0, window_bounds = array<i64: 128, 1>}, {transform_indices = @transform_1, window_bounds = array<i64: 1, 128>}, {pipeline_mode = #tpu.pipeline_mode<synchronous>, transform_indices = @transform_2, window_bounds = array<i64: 16, 128>}, {transform_indices = @transform_3, window_bounds = array<i64: 128, 128>}, {pipeline_mode = #tpu.pipeline_mode<synchronous>, transform_indices = @transform_4, window_bounds = array<i64: 128, 128>}, {pipeline_mode = #tpu.pipeline_mode<synchronous>, transform_indices = @transform_5, window_bounds = array<i64: 1, 128>}, {pipeline_mode = #tpu.pipeline_mode<synchronous>, transform_indices = @transform_6, window_bounds = array<i64: 128, 128>}, {pipeline_mode = #tpu.pipeline_mode<synchronous>, transform_indices = @transform_7, window_bounds = array<i64: 1, 128>}, {transform_indices = @transform_8, window_bounds = array<i64: 1, 128, 128>}, {transform_indices = @transform_9, window_bounds = array<i64: 1, 1, 128>}, {transform_indices = @transform_10, window_bounds = array<i64: 1, 128, 128>}, {transform_indices = @transform_11, window_bounds = array<i64: 1, 1, 128>}, {pipeline_mode = #tpu.pipeline_mode<synchronous>, transform_indices = @transform_12, window_bounds = array<i64: 128, 128>}, {pipeline_mode = #tpu.pipeline_mode<synchronous>, transform_indices = @transform_13, window_bounds = array<i64: 1, 128>}, {pipeline_mode = #tpu.pipeline_mode<synchronous>, transform_indices = @transform_14, window_bounds = array<i64: 16, 128>}]} {
    %c0_i32 = arith.constant 0 : i32
    %0 = arith.cmpi eq, %arg0, %c0_i32 : i32
    %c0_i32_0 = arith.constant 0 : i32
    %1 = arith.cmpi eq, %arg1, %c0_i32_0 : i32
    %2 = arith.andi %0, %1 : i1
    %3 = arith.extui %2 : i1 to i32
    %c0_i32_1 = arith.constant 0 : i32
    %4 = arith.cmpi ne, %3, %c0_i32_1 : i32
    scf.if %4 {
      %c0_30 = arith.constant 0 : index
      %c0_31 = arith.constant 0 : index
      %49 = vector.load %arg4[%c0_30, %c0_31] : memref<16x128xbf16, #tpu.memory_space<vmem>>, vector<16x128xbf16>
      %c0_32 = arith.constant 0 : index
      %c0_33 = arith.constant 0 : index
      %50 = vector.load %arg6[%c0_32, %c0_33] : memref<128x128xbf16, #tpu.memory_space<vmem>>, vector<128x128xbf16>
      %cst_34 = arith.constant dense<0.000000e+00> : vector<16x128xf32>
      %51 = tpu.matmul %49, %50, %cst_34 {dimension_numbers = #tpu.dot_dimension_numbers<[1], [0], [0], [1], [0, 0, 1, 1], [], []>} : vector<16x128xbf16>, vector<128x128xbf16>, vector<16x128xf32> -> vector<16x128xf32>
      %c0_35 = arith.constant 0 : index
      %c0_36 = arith.constant 0 : index
      %52 = vector.load %arg7[%c0_35, %c0_36] : memref<1x128xf32, #tpu.memory_space<vmem>>, vector<1x128xf32>
      %53 = vector.broadcast %52 : vector<1x128xf32> to vector<16x128xf32>
      %54 = arith.addf %51, %53 : vector<16x128xf32>
      %c0_37 = arith.constant 0 : index
      %c0_38 = arith.constant 0 : index
      %55 = vector.load %arg17[%c0_37, %c0_38] : memref<16x128xf32, #tpu.memory_space<vmem>>, vector<16x128xf32>
      tpu.vector_store %arg17[%c0_37, %c0_38], %54 {strides = array<i32>} : memref<16x128xf32, #tpu.memory_space<vmem>>, vector<16x128xf32>,
    } else {
    }
    %c0_i32_2 = arith.constant 0 : i32
    %5 = arith.cmpi eq, %arg1, %c0_i32_2 : i32
    %6 = arith.extui %5 : i1 to i32
    %c0_i32_3 = arith.constant 0 : i32
    %7 = arith.cmpi ne, %6, %c0_i32_3 : i32
    scf.if %7 {
      %cst_30 = arith.constant 0.000000e+00 : f32
      %49 = vector.broadcast %cst_30 : f32 to vector<16x128xf32>
      %c0_31 = arith.constant 0 : index
      %c0_32 = arith.constant 0 : index
      %50 = vector.load %arg18[%c0_31, %c0_32] : memref<16x128xf32, #tpu.memory_space<vmem>>, vector<16x128xf32>
      tpu.vector_store %arg18[%c0_31, %c0_32], %49 {strides = array<i32>} : memref<16x128xf32, #tpu.memory_space<vmem>>, vector<16x128xf32>,
    } else {
    }
    %c0 = arith.constant 0 : index
    %c0_4 = arith.constant 0 : index
    %8 = vector.load %arg5[%c0, %c0_4] : memref<128x128xbf16, #tpu.memory_space<vmem>>, vector<128x128xbf16>
    %c0_5 = arith.constant 0 : index
    %c0_6 = arith.constant 0 : index
    %9 = vector.load %arg8[%c0_5, %c0_6] : memref<128x128xbf16, #tpu.memory_space<vmem>>, vector<128x128xbf16>
    %cst = arith.constant dense<0.000000e+00> : vector<128x128xf32>
    %10 = tpu.matmul %8, %9, %cst {dimension_numbers = #tpu.dot_dimension_numbers<[1], [0], [0], [1], [0, 0, 1, 1], [], []>} : vector<128x128xbf16>, vector<128x128xbf16>, vector<128x128xf32> -> vector<128x128xf32>
    %c0_7 = arith.constant 0 : index
    %c0_8 = arith.constant 0 : index
    %11 = vector.load %arg9[%c0_7, %c0_8] : memref<1x128xf32, #tpu.memory_space<vmem>>, vector<1x128xf32>
    %12 = vector.broadcast %11 : vector<1x128xf32> to vector<128x128xf32>
    %13 = arith.addf %10, %12 : vector<128x128xf32>
    %c0_9 = arith.constant 0 : index
    %c0_10 = arith.constant 0 : index
    %14 = vector.load %arg17[%c0_9, %c0_10] : memref<16x128xf32, #tpu.memory_space<vmem>>, vector<16x128xf32>
    %15 = arith.truncf %14 : vector<16x128xf32> to vector<16x128xbf16>
    %c0_11 = arith.constant 0 : index
    %c0_12 = arith.constant 0 : index
    %16 = vector.load %arg2[%c0_11, %c0_12] : memref<128x1xi32, #tpu.memory_space<vmem>>, vector<128x1xi32>
    %c0_13 = arith.constant 0 : index
    %c0_14 = arith.constant 0 : index
    %17 = vector.load %arg3[%c0_13, %c0_14] : memref<1x128xi32, #tpu.memory_space<vmem>>, vector<1x128xi32>
    %18 = tpu.iota {dimensions = array<i32: 1>} : vector<128x16xi32>
    %19 = vector.broadcast %16 : vector<128x1xi32> to vector<128x16xi32>
    %20 = arith.cmpi eq, %18, %19 : vector<128x16xi32>
    %cst_15 = arith.constant 1.000000e+00 : f32
    %cst_16 = arith.constant 0.000000e+00 : f32
    %21 = vector.broadcast %cst_15 : f32 to vector<128x16xf32>
    %22 = vector.broadcast %cst_16 : f32 to vector<128x16xf32>
    %23 = arith.select %20, %21, %22 : vector<128x16xi1>, vector<128x16xf32>
    %24 = arith.truncf %23 : vector<128x16xf32> to vector<128x16xbf16>
    %25 = tpu.iota {dimensions = array<i32: 0>} : vector<16x128xi32>
    %26 = vector.broadcast %17 : vector<1x128xi32> to vector<16x128xi32>
    %27 = arith.cmpi eq, %25, %26 : vector<16x128xi32>
    %cst_17 = arith.constant 1.000000e+00 : f32
    %cst_18 = arith.constant 0.000000e+00 : f32
    %28 = vector.broadcast %cst_17 : f32 to vector<16x128xf32>
    %29 = vector.broadcast %cst_18 : f32 to vector<16x128xf32>
    %30 = arith.select %27, %28, %29 : vector<16x128xi1>, vector<16x128xf32>
    %31 = arith.truncf %30 : vector<16x128xf32> to vector<16x128xbf16>
    %cst_19 = arith.constant dense<0.000000e+00> : vector<128x128xf32>
    %32 = tpu.matmul %24, %15, %cst_19 {dimension_numbers = #tpu.dot_dimension_numbers<[1], [0], [0], [1], [0, 0, 1, 1], [], []>} : vector<128x16xbf16>, vector<16x128xbf16>, vector<128x128xf32> -> vector<128x128xf32>
    %33 = arith.addf %32, %13 : vector<128x128xf32>
    %cst_20 = arith.constant 0.000000e+00 : f32
    %34 = vector.broadcast %cst_20 : f32 to vector<128x128xf32>
    %35 = arith.maximumf %33, %34 : vector<128x128xf32>
    %36 = arith.truncf %35 : vector<128x128xf32> to vector<128x128xbf16>
    %c0_21 = arith.constant 0 : index
    %c0_22 = arith.constant 0 : index
    %37 = vector.load %arg18[%c0_21, %c0_22] : memref<16x128xf32, #tpu.memory_space<vmem>>, vector<16x128xf32>
    %cst_23 = arith.constant dense<0.000000e+00> : vector<16x128xf32>
    %38 = tpu.matmul %31, %36, %cst_23 {dimension_numbers = #tpu.dot_dimension_numbers<[1], [0], [0], [1], [0, 0, 1, 1], [], []>} : vector<16x128xbf16>, vector<128x128xbf16>, vector<16x128xf32> -> vector<16x128xf32>
    %39 = arith.addf %37, %38 : vector<16x128xf32>
    %c0_24 = arith.constant 0 : index
    %c0_25 = arith.constant 0 : index
    %40 = vector.load %arg18[%c0_24, %c0_25] : memref<16x128xf32, #tpu.memory_space<vmem>>, vector<16x128xf32>
    tpu.vector_store %arg18[%c0_24, %c0_25], %39 {strides = array<i32>} : memref<16x128xf32, #tpu.memory_space<vmem>>, vector<16x128xf32>,
    %c0_i32_26 = arith.constant 0 : i32
    %41 = arith.cmpi eq, %arg1, %c0_i32_26 : i32
    %42 = arith.extui %41 : i1 to i32
    %c0_i32_27 = arith.constant 0 : i32
    %43 = arith.cmpi ne, %42, %c0_i32_27 : i32
    scf.if %43 {
      %c0_30 = arith.constant 0 : index
      %c0_31 = arith.constant 0 : index
      %49 = vector.load %arg17[%c0_30, %c0_31] : memref<16x128xf32, #tpu.memory_space<vmem>>, vector<16x128xf32>
      %c0_32 = arith.constant 0 : index
      %c0_33 = arith.constant 0 : index
      %50 = vector.load %arg18[%c0_32, %c0_33] : memref<16x128xf32, #tpu.memory_space<vmem>>, vector<16x128xf32>
      %51 = arith.addf %49, %50 : vector<16x128xf32>
      %52 = arith.truncf %51 : vector<16x128xf32> to vector<16x128xbf16>
      %c0_34 = arith.constant 0 : index
      %c0_35 = arith.constant 0 : index
      %c0_36 = arith.constant 0 : index
      %53 = vector.load %arg10[%c0_34, %c0_35, %c0_36] : memref<1x128x128xbf16, #tpu.memory_space<vmem>>, vector<1x128x128xbf16>
      %54 = vector.shape_cast %53 : vector<1x128x128xbf16> to vector<128x128xbf16>
      %cst_37 = arith.constant dense<0.000000e+00> : vector<16x128xf32>
      %55 = tpu.matmul %52, %54, %cst_37 {dimension_numbers = #tpu.dot_dimension_numbers<[1], [0], [0], [1], [0, 0, 1, 1], [], []>} : vector<16x128xbf16>, vector<128x128xbf16>, vector<16x128xf32> -> vector<16x128xf32>
      %c0_38 = arith.constant 0 : index
      %c0_39 = arith.constant 0 : index
      %c0_40 = arith.constant 0 : index
      %56 = vector.load %arg11[%c0_38, %c0_39, %c0_40] : memref<1x1x128xf32, #tpu.memory_space<vmem>>, vector<1x1x128xf32>
      %57 = vector.shape_cast %56 : vector<1x1x128xf32> to vector<1x128xf32>
      %58 = vector.broadcast %57 : vector<1x128xf32> to vector<16x128xf32>
      %59 = arith.addf %55, %58 : vector<16x128xf32>
      %cst_41 = arith.constant 0.000000e+00 : f32
      %60 = vector.broadcast %cst_41 : f32 to vector<16x128xf32>
      %61 = arith.maximumf %59, %60 : vector<16x128xf32>
      %62 = arith.truncf %61 : vector<16x128xf32> to vector<16x128xbf16>
      %c0_42 = arith.constant 0 : index
      %c0_43 = arith.constant 0 : index
      %c0_44 = arith.constant 0 : index
      %63 = vector.load %arg12[%c0_42, %c0_43, %c0_44] : memref<1x128x128xbf16, #tpu.memory_space<vmem>>, vector<1x128x128xbf16>
      %64 = vector.shape_cast %63 : vector<1x128x128xbf16> to vector<128x128xbf16>
      %cst_45 = arith.constant dense<0.000000e+00> : vector<16x128xf32>
      %65 = tpu.matmul %62, %64, %cst_45 {dimension_numbers = #tpu.dot_dimension_numbers<[1], [0], [0], [1], [0, 0, 1, 1], [], []>} : vector<16x128xbf16>, vector<128x128xbf16>, vector<16x128xf32> -> vector<16x128xf32>
      %c0_46 = arith.constant 0 : index
      %c0_47 = arith.constant 0 : index
      %c0_48 = arith.constant 0 : index
      %66 = vector.load %arg13[%c0_46, %c0_47, %c0_48] : memref<1x1x128xf32, #tpu.memory_space<vmem>>, vector<1x1x128xf32>
      %67 = vector.shape_cast %66 : vector<1x1x128xf32> to vector<1x128xf32>
      %68 = vector.broadcast %67 : vector<1x128xf32> to vector<16x128xf32>
      %69 = arith.addf %65, %68 : vector<16x128xf32>
      %cst_49 = arith.constant 0.000000e+00 : f32
      %70 = vector.broadcast %cst_49 : f32 to vector<16x128xf32>
      %71 = arith.maximumf %69, %70 : vector<16x128xf32>
      %72 = arith.addf %49, %71 : vector<16x128xf32>
      %c0_50 = arith.constant 0 : index
      %c0_51 = arith.constant 0 : index
      %73 = vector.load %arg17[%c0_50, %c0_51] : memref<16x128xf32, #tpu.memory_space<vmem>>, vector<16x128xf32>
      tpu.vector_store %arg17[%c0_50, %c0_51], %72 {strides = array<i32>} : memref<16x128xf32, #tpu.memory_space<vmem>>, vector<16x128xf32>,
    } else {
    }
    %c1_i32 = arith.constant 1 : i32
    %44 = arith.cmpi eq, %arg0, %c1_i32 : i32
    %c0_i32_28 = arith.constant 0 : i32
    %45 = arith.cmpi eq, %arg1, %c0_i32_28 : i32
    %46 = arith.andi %44, %45 : i1
    %47 = arith.extui %46 : i1 to i32
    %c0_i32_29 = arith.constant 0 : i32
    %48 = arith.cmpi ne, %47, %c0_i32_29 : i32
    scf.if %48 {
      %c0_30 = arith.constant 0 : index
      %c0_31 = arith.constant 0 : index
      %49 = vector.load %arg17[%c0_30, %c0_31] : memref<16x128xf32, #tpu.memory_space<vmem>>, vector<16x128xf32>
      %50 = arith.truncf %49 : vector<16x128xf32> to vector<16x128xbf16>
      %c0_32 = arith.constant 0 : index
      %c0_33 = arith.constant 0 : index
      %51 = vector.load %arg14[%c0_32, %c0_33] : memref<128x128xbf16, #tpu.memory_space<vmem>>, vector<128x128xbf16>
      %cst_34 = arith.constant dense<0.000000e+00> : vector<16x128xf32>
      %52 = tpu.matmul %50, %51, %cst_34 {dimension_numbers = #tpu.dot_dimension_numbers<[1], [0], [0], [1], [0, 0, 1, 1], [], []>} : vector<16x128xbf16>, vector<128x128xbf16>, vector<16x128xf32> -> vector<16x128xf32>
      %c0_35 = arith.constant 0 : index
      %c0_36 = arith.constant 0 : index
      %53 = vector.load %arg15[%c0_35, %c0_36] : memref<1x128xf32, #tpu.memory_space<vmem>>, vector<1x128xf32>
      %54 = vector.broadcast %53 : vector<1x128xf32> to vector<16x128xf32>
      %55 = arith.addf %52, %54 : vector<16x128xf32>
      %56 = arith.truncf %55 : vector<16x128xf32> to vector<16x128xbf16>
      %c0_37 = arith.constant 0 : index
      %c0_38 = arith.constant 0 : index
      %57 = vector.load %arg16[%c0_37, %c0_38] : memref<16x128xbf16, #tpu.memory_space<vmem>>, vector<16x128xbf16>
      tpu.vector_store %arg16[%c0_37, %c0_38], %56 {strides = array<i32>} : memref<16x128xbf16, #tpu.memory_space<vmem>>, vector<16x128xbf16>,
    } else {
    }
    return
  }
  func.func @transform_0(%arg0: i32, %arg1: i32) -> (i32, i32) {
    %c0_i32 = arith.constant 0 : i32
    %c0_i32_0 = arith.constant 0 : i32
    return %arg1, %c0_i32 : i32, i32
  }
  func.func @transform_1(%arg0: i32, %arg1: i32) -> (i32, i32) {
    %c0_i32 = arith.constant 0 : i32
    %c0_i32_0 = arith.constant 0 : i32
    return %c0_i32, %arg1 : i32, i32
  }
  func.func @transform_2(%arg0: i32, %arg1: i32) -> (i32, i32) {
    %c0_i32 = arith.constant 0 : i32
    %c0_i32_0 = arith.constant 0 : i32
    %c0_i32_1 = arith.constant 0 : i32
    return %c0_i32, %c0_i32_0 : i32, i32
  }
  func.func @transform_3(%arg0: i32, %arg1: i32) -> (i32, i32) {
    %c0_i32 = arith.constant 0 : i32
    %c0_i32_0 = arith.constant 0 : i32
    return %arg1, %c0_i32 : i32, i32
  }
  func.func @transform_4(%arg0: i32, %arg1: i32) -> (i32, i32) {
    %c0_i32 = arith.constant 0 : i32
    %c0_i32_0 = arith.constant 0 : i32
    %c0_i32_1 = arith.constant 0 : i32
    return %c0_i32, %c0_i32_0 : i32, i32
  }
  func.func @transform_5(%arg0: i32, %arg1: i32) -> (i32, i32) {
    %c0_i32 = arith.constant 0 : i32
    %c0_i32_0 = arith.constant 0 : i32
    %c0_i32_1 = arith.constant 0 : i32
    return %c0_i32, %c0_i32_0 : i32, i32
  }
  func.func @transform_6(%arg0: i32, %arg1: i32) -> (i32, i32) {
    %c0_i32 = arith.constant 0 : i32
    %c0_i32_0 = arith.constant 0 : i32
    %c0_i32_1 = arith.constant 0 : i32
    return %c0_i32, %c0_i32_0 : i32, i32
  }
  func.func @transform_7(%arg0: i32, %arg1: i32) -> (i32, i32) {
    %c0_i32 = arith.constant 0 : i32
    %c0_i32_0 = arith.constant 0 : i32
    %c0_i32_1 = arith.constant 0 : i32
    return %c0_i32, %c0_i32_0 : i32, i32
  }
  func.func @transform_8(%arg0: i32, %arg1: i32) -> (i32, i32, i32) {
    %c0_i32 = arith.constant 0 : i32
    %c0_i32_0 = arith.constant 0 : i32
    %c0_i32_1 = arith.constant 0 : i32
    return %arg0, %c0_i32, %c0_i32_0 : i32, i32, i32
  }
  func.func @transform_9(%arg0: i32, %arg1: i32) -> (i32, i32, i32) {
    %c0_i32 = arith.constant 0 : i32
    %c0_i32_0 = arith.constant 0 : i32
    %c0_i32_1 = arith.constant 0 : i32
    return %arg0, %c0_i32, %c0_i32_0 : i32, i32, i32
  }
  func.func @transform_10(%arg0: i32, %arg1: i32) -> (i32, i32, i32) {
    %c0_i32 = arith.constant 0 : i32
    %c0_i32_0 = arith.constant 0 : i32
    %c0_i32_1 = arith.constant 0 : i32
    return %arg0, %c0_i32, %c0_i32_0 : i32, i32, i32
  }
  func.func @transform_11(%arg0: i32, %arg1: i32) -> (i32, i32, i32) {
    %c0_i32 = arith.constant 0 : i32
    %c0_i32_0 = arith.constant 0 : i32
    %c0_i32_1 = arith.constant 0 : i32
    return %arg0, %c0_i32, %c0_i32_0 : i32, i32, i32
  }
  func.func @transform_12(%arg0: i32, %arg1: i32) -> (i32, i32) {
    %c0_i32 = arith.constant 0 : i32
    %c0_i32_0 = arith.constant 0 : i32
    %c0_i32_1 = arith.constant 0 : i32
    return %c0_i32, %c0_i32_0 : i32, i32
  }
  func.func @transform_13(%arg0: i32, %arg1: i32) -> (i32, i32) {
    %c0_i32 = arith.constant 0 : i32
    %c0_i32_0 = arith.constant 0 : i32
    %c0_i32_1 = arith.constant 0 : i32
    return %c0_i32, %c0_i32_0 : i32, i32
  }
  func.func @transform_14(%arg0: i32, %arg1: i32) -> (i32, i32) {
    %c0_i32 = arith.constant 0 : i32
    %c0_i32_0 = arith.constant 0 : i32
    %c0_i32_1 = arith.constant 0 : i32
    return %c0_i32, %c0_i32_0 : i32, i32
  }
}

</mosaic_0001>

<llo_original>
// kernel: tpu_custom_call.1
$region0: #{tpu_custom_call.1}
  #allocation0 [shape = 'u32[]', space=smem, size = 0x4, offset = 0x4, fixed_abs, tag = 'smem constant byte address 0x4 - core index']
  #allocation1 [shape = 'u32[144,128]{1,0:T(1,128)}', space=vmem, size = 0x12000, scoped, tag = 'internal scratch']
  #allocation2 [shape = 'f32[16,128]{1,0:T(8,128)}', space=vmem, size = 0x2000, scoped, tag = 'scratch operand']
  #allocation3 [shape = 'f32[16,128]{1,0:T(8,128)}', space=vmem, size = 0x2000, scoped, tag = 'scratch operand']
  %s0 = inlined_call_operand.vmem [shape: s32[128,1], index: 0, kind: input, shape index: {}]
  %s1 = inlined_call_operand.vmem [shape: s32[1,128], index: 1, kind: input, shape index: {}]
  %s2 = inlined_call_operand.vmem [shape: bf16[16,128], index: 2, kind: input, shape index: {}]
  %s3 = inlined_call_operand.hbm [shape: bf16[128,128], index: 3, kind: input, shape index: {}]
  %s4 = inlined_call_operand.hbm [shape: bf16[128,128], index: 4, kind: input, shape index: {}]
  %s5 = inlined_call_operand.vmem [shape: f32[1,128], index: 5, kind: input, shape index: {}]
  %s6 = inlined_call_operand.hbm [shape: bf16[128,128], index: 6, kind: input, shape index: {}]
  %s7 = inlined_call_operand.vmem [shape: f32[1,128], index: 7, kind: input, shape index: {}]
  %s8 = inlined_call_operand.vmem [shape: bf16[2,128,128], index: 8, kind: input, shape index: {}]
  %s9 = inlined_call_operand.vmem [shape: f32[2,1,128], index: 9, kind: input, shape index: {}]
  %s10 = inlined_call_operand.hbm [shape: bf16[2,128,128], index: 10, kind: input, shape index: {}]
  %s11 = inlined_call_operand.vmem [shape: f32[2,1,128], index: 11, kind: input, shape index: {}]
  %s12 = inlined_call_operand.hbm [shape: bf16[128,128], index: 12, kind: input, shape index: {}]
  %s13 = inlined_call_operand.vmem [shape: f32[1,128], index: 13, kind: input, shape index: {}]
  %s14 = inlined_call_operand.hbm [shape: bf16[16,128], index: 14, kind: output, shape index: {}]
  %s15 = sld [smem:[#allocation0]]
  $region125: #{tpu_custom_call.1} parent=0
    _
  %s17 = ssub.s32 1, %s15
  %s18 = scalar_select 0, %s17, %s15
  $region1: #{tpu_custom_call.1} parent=0
    #allocation4 [shape = 'u8[32768]{0}', space=vmem, size = 0x8000, scoped, tag = 'input window, operand 3, single buffered']
    #allocation5 [shape = 's32[2]{0}', space=sflag, size = 0x8, scoped, tag = 'scoped memory for tpu_custom_call.1']
    #allocation6 [shape = 's32[2]{0}', space=sflag, size = 0x8, scoped, tag = 'scoped memory for tpu_custom_call.1']
    #allocation7 [shape = 'u8[32768]{0}', space=vmem, size = 0x8000, scoped, tag = 'input window, operand 4, single buffered']
    #allocation8 [shape = 's32[1]{0}', space=sflag, size = 0x4, scoped, tag = 'scoped memory for tpu_custom_call.1']
    #allocation9 [shape = 'u8[32768]{0}', space=vmem, size = 0x8000, scoped, tag = 'input window, operand 6, single buffered']
    #allocation10 [shape = 'u8[65536]{0}', space=vmem, size = 0x10000, scoped, tag = 'input window, operand 10']
    #allocation11 [shape = 's32[2]{0}', space=sflag, size = 0x8, scoped, tag = 'scoped memory for tpu_custom_call.1']
    #allocation12 [shape = 'u8[32768]{0}', space=vmem, size = 0x8000, scoped, tag = 'input window, operand 12, single buffered']
    #allocation13 [shape = 'u8[4096]{0}', space=vmem, size = 0x1000, scoped, tag = 'output window, operand 0, single buffered']
    %19 = vsyncpa [#allocation5], 0
    %20 = vsyncpa [#allocation8], 0
    %21 = vsyncpa [#allocation11], 0
    %s22 = scalar_lea.sflag [#allocation11], 1
    %23 = vsyncpa %s22, 0
    %24 = vsyncpa [#allocation6], 0
    loop: start=0, step=1, limit=4
    $region2: #{tpu_custom_call.1} parent=1 // loop_pre_header
      _
    $region3: #{tpu_custom_call.1} parent=1 // loop_header
      %s26 = sphi 0, %s30
      %p27 = scmp.ge.s32.totalorder %s26, 4
      %s33 = sphi 0, %s45
      %s34 = sphi 0, %s41
      %s35 = sphi 0, %s33
      %s36 = sphi 0, %s34
      %s37 = sphi 0, %s35
      %s38 = sphi 0, %s36
      %s48 = sphi 0, %s50
      %s51 = sphi 0, %s48
      %s52 = sphi 0, %s51
      %s68 = sphi 0, %s52
      %s74 = sphi 0, %s76
      %s77 = sphi 0, %s74
      %s78 = sphi 0, %s77
      %s94 = sphi 0, %s78
      %s98 = sphi 0, %s98
      %s100 = sphi 0, %s98
      %s101 = sphi 0, %s100
      %s115 = sphi 0, %s101
      %s121 = sphi 0, %s123
      %s124 = sphi 0, %s121
      %s125 = sphi 0, %s124
      %s141 = sphi 0, %s125
      %s145 = sphi 0, %s145
      %s147 = sphi 0, %s145
      %s148 = sphi 0, %s147
      %s162 = sphi 0, %s148
      %s166 = sphi 0, %s166
      %s168 = sphi 0, %s166
      %s169 = sphi 0, %s168
      %s183 = sphi 0, %s169
      %s187 = sphi 0, %s187
      %s189 = sphi 0, %s187
      %s190 = sphi 0, %s189
      %s204 = sphi 0, %s190
      %s208 = sphi 0, %s208
      %s210 = sphi 0, %s208
      %s211 = sphi 0, %s210
      %s225 = sphi 0, %s211
      %s231 = sphi 0, %s233
      %s234 = sphi 0, %s231
      %s235 = sphi 0, %s234
      %s251 = sphi 0, %s235
      %s257 = sphi 0, %s259
      %s260 = sphi 0, %s257
      %s261 = sphi 0, %s260
      %s277 = sphi 0, %s261
      %s283 = sphi 0, %s285
      %s286 = sphi 0, %s283
      %s287 = sphi 0, %s286
      %s303 = sphi 0, %s287
      %s309 = sphi 0, %s311
      %s312 = sphi 0, %s309
      %s313 = sphi 0, %s312
      %s329 = sphi 0, %s313
      %s333 = sphi 0, %s333
      %s335 = sphi 0, %s333
      %s336 = sphi 0, %s335
      %s350 = sphi 0, %s336
      %s354 = sphi 0, %s354
      %s356 = sphi 0, %s354
      %s357 = sphi 0, %s356
      %s371 = sphi 0, %s357
      %s375 = sphi 0, %s375
      %s377 = sphi 0, %s375
      %s378 = sphi 0, %s377
      %s392 = sphi 0, %s378
    $region4: #{tpu_custom_call.1} parent=1 // loop_header_branch
      %29 = sbr.rel (%p27) target = $region8
    $region5: #{tpu_custom_call.1} parent=1 // loop_body
      %s31 = ssub.s32 %s26, 1
      %s32 = ssub.s32 %s26, 2
      %s39 = sadd.s32 1, %s34
      %p40 = scmp.ge.s32.totalorder %s39, 1
      %s41 = scalar_select %p40, 0, %s39
      %s42 = sadd.s32 1, %s33
      %s43 = scalar_select %p40, %s42, %s33
      %p44 = scmp.ge.s32.totalorder %s43, 2
      %s45 = scalar_select %p44, 0, %s43
      %s46 = ssub.s32 %s34, %s41
      %p47 = scmp.eq.s32.totalorder %s46, 0
      %s49 = sadd.s32 %s48, 1
      %s50 = scalar_select %p47, %s48, %s49
      %p53 = pneg %p47
      %p54 = scmp.eq.s32.totalorder %s26, 1
      %p55 = por %p53, %p54
      %p56 = scmp.ne.s32.totalorder %s48, %s51
      %p57 = scmp.eq.s32.totalorder %s26, 0
      %p58 = por %p56, %p57
      %p59 = scmp.ne.s32.totalorder %s48, %s51
      %p60 = scmp.eq.s32.totalorder %s31, 1
      %p61 = por %p59, %p60
      %p62 = scmp.ne.s32.totalorder %s51, %s52
      %p63 = scmp.eq.s32.totalorder %s31, 0
      %p64 = por %p62, %p63
      %p65 = scmp.ne.s32.totalorder %s51, %s52
      %p66 = scmp.eq.s32.totalorder %s32, 1
      %p67 = por %p65, %p66
      %p69 = scmp.ne.s32.totalorder %s52, %s68
      %p70 = scmp.eq.s32.totalorder %s32, 0
      %p71 = por %p69, %p70
      %s72 = ssub.s32 %s34, %s41
      %p73 = scmp.eq.s32.totalorder %s72, 0
      %s75 = sadd.s32 %s74, 1
      %s76 = scalar_select %p73, %s74, %s75
      %p79 = pneg %p73
      %p80 = scmp.eq.s32.totalorder %s26, 1
      %p81 = por %p79, %p80
      %p82 = scmp.ne.s32.totalorder %s74, %s77
      %p83 = scmp.eq.s32.totalorder %s26, 0
      %p84 = por %p82, %p83
      %p85 = scmp.ne.s32.totalorder %s74, %s77
      %p86 = scmp.eq.s32.totalorder %s31, 1
      %p87 = por %p85, %p86
      %p88 = scmp.ne.s32.totalorder %s77, %s78
      %p89 = scmp.eq.s32.totalorder %s31, 0
      %p90 = por %p88, %p89
      %p91 = scmp.ne.s32.totalorder %s77, %s78
      %p92 = scmp.eq.s32.totalorder %s32, 1
      %p93 = por %p91, %p92
      %p95 = scmp.ne.s32.totalorder %s78, %s94
      %p96 = scmp.eq.s32.totalorder %s32, 0
      %p97 = por %p95, %p96
      %s99 = sadd.s32 %s98, 1
      %p102 = scmp.eq.s32.totalorder %s26, 1
      %p103 = scmp.ne.s32.totalorder %s98, %s100
      %p104 = scmp.eq.s32.totalorder %s26, 0
      %p105 = por %p103, %p104
      %p106 = scmp.ne.s32.totalorder %s98, %s100
      %p107 = scmp.eq.s32.totalorder %s31, 1
      %p108 = por %p106, %p107
      %p109 = scmp.ne.s32.totalorder %s100, %s101
      %p110 = scmp.eq.s32.totalorder %s31, 0
      %p111 = por %p109, %p110
      %p112 = scmp.ne.s32.totalorder %s100, %s101
      %p113 = scmp.eq.s32.totalorder %s32, 1
      %p114 = por %p112, %p113
      %p116 = scmp.ne.s32.totalorder %s101, %s115
      %p117 = scmp.eq.s32.totalorder %s32, 0
      %p118 = por %p116, %p117
      %s119 = ssub.s32 %s34, %s41
      %p120 = scmp.eq.s32.totalorder %s119, 0
      %s122 = sadd.s32 %s121, 1
      %s123 = scalar_select %p120, %s121, %s122
      %p126 = pneg %p120
      %p127 = scmp.eq.s32.totalorder %s26, 1
      %p128 = por %p126, %p127
      %p129 = scmp.ne.s32.totalorder %s121, %s124
      %p130 = scmp.eq.s32.totalorder %s26, 0
      %p131 = por %p129, %p130
      %p132 = scmp.ne.s32.totalorder %s121, %s124
      %p133 = scmp.eq.s32.totalorder %s31, 1
      %p134 = por %p132, %p133
      %p135 = scmp.ne.s32.totalorder %s124, %s125
      %p136 = scmp.eq.s32.totalorder %s31, 0
      %p137 = por %p135, %p136
      %p138 = scmp.ne.s32.totalorder %s124, %s125
      %p139 = scmp.eq.s32.totalorder %s32, 1
      %p140 = por %p138, %p139
      %p142 = scmp.ne.s32.totalorder %s125, %s141
      %p143 = scmp.eq.s32.totalorder %s32, 0
      %p144 = por %p142, %p143
      %s146 = sadd.s32 %s145, 1
      %p149 = scmp.eq.s32.totalorder %s26, 1
      %p150 = scmp.ne.s32.totalorder %s145, %s147
      %p151 = scmp.eq.s32.totalorder %s26, 0
      %p152 = por %p150, %p151
      %p153 = scmp.ne.s32.totalorder %s145, %s147
      %p154 = scmp.eq.s32.totalorder %s31, 1
      %p155 = por %p153, %p154
      %p156 = scmp.ne.s32.totalorder %s147, %s148
      %p157 = scmp.eq.s32.totalorder %s31, 0
      %p158 = por %p156, %p157
      %p159 = scmp.ne.s32.totalorder %s147, %s148
      %p160 = scmp.eq.s32.totalorder %s32, 1
      %p161 = por %p159, %p160
      %p163 = scmp.ne.s32.totalorder %s148, %s162
      %p164 = scmp.eq.s32.totalorder %s32, 0
      %p165 = por %p163, %p164
      %s167 = sadd.s32 %s166, 1
      %p170 = scmp.eq.s32.totalorder %s26, 1
      %p171 = scmp.ne.s32.totalorder %s166, %s168
      %p172 = scmp.eq.s32.totalorder %s26, 0
      %p173 = por %p171, %p172
      %p174 = scmp.ne.s32.totalorder %s166, %s168
      %p175 = scmp.eq.s32.totalorder %s31, 1
      %p176 = por %p174, %p175
      %p177 = scmp.ne.s32.totalorder %s168, %s169
      %p178 = scmp.eq.s32.totalorder %s31, 0
      %p179 = por %p177, %p178
      %p180 = scmp.ne.s32.totalorder %s168, %s169
      %p181 = scmp.eq.s32.totalorder %s32, 1
      %p182 = por %p180, %p181
      %p184 = scmp.ne.s32.totalorder %s169, %s183
      %p185 = scmp.eq.s32.totalorder %s32, 0
      %p186 = por %p184, %p185
      %s188 = sadd.s32 %s187, 1
      %p191 = scmp.eq.s32.totalorder %s26, 1
      %p192 = scmp.ne.s32.totalorder %s187, %s189
      %p193 = scmp.eq.s32.totalorder %s26, 0
      %p194 = por %p192, %p193
      %p195 = scmp.ne.s32.totalorder %s187, %s189
      %p196 = scmp.eq.s32.totalorder %s31, 1
      %p197 = por %p195, %p196
      %p198 = scmp.ne.s32.totalorder %s189, %s190
      %p199 = scmp.eq.s32.totalorder %s31, 0
      %p200 = por %p198, %p199
      %p201 = scmp.ne.s32.totalorder %s189, %s190
      %p202 = scmp.eq.s32.totalorder %s32, 1
      %p203 = por %p201, %p202
      %p205 = scmp.ne.s32.totalorder %s190, %s204
      %p206 = scmp.eq.s32.totalorder %s32, 0
      %p207 = por %p205, %p206
      %s209 = sadd.s32 %s208, 1
      %p212 = scmp.eq.s32.totalorder %s26, 1
      %p213 = scmp.ne.s32.totalorder %s208, %s210
      %p214 = scmp.eq.s32.totalorder %s26, 0
      %p215 = por %p213, %p214
      %p216 = scmp.ne.s32.totalorder %s208, %s210
      %p217 = scmp.eq.s32.totalorder %s31, 1
      %p218 = por %p216, %p217
      %p219 = scmp.ne.s32.totalorder %s210, %s211
      %p220 = scmp.eq.s32.totalorder %s31, 0
      %p221 = por %p219, %p220
      %p222 = scmp.ne.s32.totalorder %s210, %s211
      %p223 = scmp.eq.s32.totalorder %s32, 1
      %p224 = por %p222, %p223
      %p226 = scmp.ne.s32.totalorder %s211, %s225
      %p227 = scmp.eq.s32.totalorder %s32, 0
      %p228 = por %p226, %p227
      %s229 = ssub.s32 %s33, %s45
      %p230 = scmp.eq.s32.totalorder %s229, 0
      %s232 = sadd.s32 %s231, 1
      %s233 = scalar_select %p230, %s231, %s232
      %p236 = pneg %p230
      %p237 = scmp.eq.s32.totalorder %s26, 1
      %p238 = por %p236, %p237
      %p239 = scmp.ne.s32.totalorder %s231, %s234
      %p240 = scmp.eq.s32.totalorder %s26, 0
      %p241 = por %p239, %p240
      %p242 = scmp.ne.s32.totalorder %s231, %s234
      %p243 = scmp.eq.s32.totalorder %s31, 1
      %p244 = por %p242, %p243
      %p245 = scmp.ne.s32.totalorder %s234, %s235
      %p246 = scmp.eq.s32.totalorder %s31, 0
      %p247 = por %p245, %p246
      %p248 = scmp.ne.s32.totalorder %s234, %s235
      %p249 = scmp.eq.s32.totalorder %s32, 1
      %p250 = por %p248, %p249
      %p252 = scmp.ne.s32.totalorder %s235, %s251
      %p253 = scmp.eq.s32.totalorder %s32, 0
      %p254 = por %p252, %p253
      %s255 = ssub.s32 %s33, %s45
      %p256 = scmp.eq.s32.totalorder %s255, 0
      %s258 = sadd.s32 %s257, 1
      %s259 = scalar_select %p256, %s257, %s258
      %p262 = pneg %p256
      %p263 = scmp.eq.s32.totalorder %s26, 1
      %p264 = por %p262, %p263
      %p265 = scmp.ne.s32.totalorder %s257, %s260
      %p266 = scmp.eq.s32.totalorder %s26, 0
      %p267 = por %p265, %p266
      %p268 = scmp.ne.s32.totalorder %s257, %s260
      %p269 = scmp.eq.s32.totalorder %s31, 1
      %p270 = por %p268, %p269
      %p271 = scmp.ne.s32.totalorder %s260, %s261
      %p272 = scmp.eq.s32.totalorder %s31, 0
      %p273 = por %p271, %p272
      %p274 = scmp.ne.s32.totalorder %s260, %s261
      %p275 = scmp.eq.s32.totalorder %s32, 1
      %p276 = por %p274, %p275
      %p278 = scmp.ne.s32.totalorder %s261, %s277
      %p279 = scmp.eq.s32.totalorder %s32, 0
      %p280 = por %p278, %p279
      %s281 = ssub.s32 %s33, %s45
      %p282 = scmp.eq.s32.totalorder %s281, 0
      %s284 = sadd.s32 %s283, 1
      %s285 = scalar_select %p282, %s283, %s284
      %p288 = pneg %p282
      %p289 = scmp.eq.s32.totalorder %s26, 1
      %p290 = por %p288, %p289
      %p291 = scmp.ne.s32.totalorder %s283, %s286
      %p292 = scmp.eq.s32.totalorder %s26, 0
      %p293 = por %p291, %p292
      %p294 = scmp.ne.s32.totalorder %s283, %s286
      %p295 = scmp.eq.s32.totalorder %s31, 1
      %p296 = por %p294, %p295
      %p297 = scmp.ne.s32.totalorder %s286, %s287
      %p298 = scmp.eq.s32.totalorder %s31, 0
      %p299 = por %p297, %p298
      %p300 = scmp.ne.s32.totalorder %s286, %s287
      %p301 = scmp.eq.s32.totalorder %s32, 1
      %p302 = por %p300, %p301
      %p304 = scmp.ne.s32.totalorder %s287, %s303
      %p305 = scmp.eq.s32.totalorder %s32, 0
      %p306 = por %p304, %p305
      %s307 = ssub.s32 %s33, %s45
      %p308 = scmp.eq.s32.totalorder %s307, 0
      %s310 = sadd.s32 %s309, 1
      %s311 = scalar_select %p308, %s309, %s310
      %p314 = pneg %p308
      %p315 = scmp.eq.s32.totalorder %s26, 1
      %p316 = por %p314, %p315
      %p317 = scmp.ne.s32.totalorder %s309, %s312
      %p318 = scmp.eq.s32.totalorder %s26, 0
      %p319 = por %p317, %p318
      %p320 = scmp.ne.s32.totalorder %s309, %s312
      %p321 = scmp.eq.s32.totalorder %s31, 1
      %p322 = por %p320, %p321
      %p323 = scmp.ne.s32.totalorder %s312, %s313
      %p324 = scmp.eq.s32.totalorder %s31, 0
      %p325 = por %p323, %p324
      %p326 = scmp.ne.s32.totalorder %s312, %s313
      %p327 = scmp.eq.s32.totalorder %s32, 1
      %p328 = por %p326, %p327
      %p330 = scmp.ne.s32.totalorder %s313, %s329
      %p331 = scmp.eq.s32.totalorder %s32, 0
      %p332 = por %p330, %p331
      %s334 = sadd.s32 %s333, 1
      %p337 = scmp.eq.s32.totalorder %s26, 1
      %p338 = scmp.ne.s32.totalorder %s333, %s335
      %p339 = scmp.eq.s32.totalorder %s26, 0
      %p340 = por %p338, %p339
      %p341 = scmp.ne.s32.totalorder %s333, %s335
      %p342 = scmp.eq.s32.totalorder %s31, 1
      %p343 = por %p341, %p342
      %p344 = scmp.ne.s32.totalorder %s335, %s336
      %p345 = scmp.eq.s32.totalorder %s31, 0
      %p346 = por %p344, %p345
      %p347 = scmp.ne.s32.totalorder %s335, %s336
      %p348 = scmp.eq.s32.totalorder %s32, 1
      %p349 = por %p347, %p348
      %p351 = scmp.ne.s32.totalorder %s336, %s350
      %p352 = scmp.eq.s32.totalorder %s32, 0
      %p353 = por %p351, %p352
      %s355 = sadd.s32 %s354, 1
      %p358 = scmp.eq.s32.totalorder %s26, 1
      %p359 = scmp.ne.s32.totalorder %s354, %s356
      %p360 = scmp.eq.s32.totalorder %s26, 0
      %p361 = por %p359, %p360
      %p362 = scmp.ne.s32.totalorder %s354, %s356
      %p363 = scmp.eq.s32.totalorder %s31, 1
      %p364 = por %p362, %p363
      %p365 = scmp.ne.s32.totalorder %s356, %s357
      %p366 = scmp.eq.s32.totalorder %s31, 0
      %p367 = por %p365, %p366
      %p368 = scmp.ne.s32.totalorder %s356, %s357
      %p369 = scmp.eq.s32.totalorder %s32, 1
      %p370 = por %p368, %p369
      %p372 = scmp.ne.s32.totalorder %s357, %s371
      %p373 = scmp.eq.s32.totalorder %s32, 0
      %p374 = por %p372, %p373
      %s376 = sadd.s32 %s375, 1
      %p379 = scmp.eq.s32.totalorder %s26, 1
      %p380 = scmp.ne.s32.totalorder %s375, %s377
      %p381 = scmp.eq.s32.totalorder %s26, 0
      %p382 = por %p380, %p381
      %p383 = scmp.ne.s32.totalorder %s375, %s377
      %p384 = scmp.eq.s32.totalorder %s31, 1
      %p385 = por %p383, %p384
      %p386 = scmp.ne.s32.totalorder %s377, %s378
      %p387 = scmp.eq.s32.totalorder %s31, 0
      %p388 = por %p386, %p387
      %p389 = scmp.ne.s32.totalorder %s377, %s378
      %p390 = scmp.eq.s32.totalorder %s32, 1
      %p391 = por %p389, %p390
      %p393 = scmp.ne.s32.totalorder %s378, %s392
      %p394 = scmp.eq.s32.totalorder %s32, 0
      %p395 = por %p393, %p394
      %p396 = scmp.le.s32.totalorder 1, %s26
      %p397 = scmp.lt.s32.totalorder %s26, 3
      %p398 = pnand %p396, %p397
      %p399 = pneg %p398
      // Predicated region
      $region9: #{tpu_custom_call.1} parent=5 // pred_check
        _
      $region10: #{tpu_custom_call.1} parent=5 // pred_check_branch
        %401 = sbr.rel (%p398) target = $region12
      $region11: #{tpu_custom_call.1} parent=5 // pred_region
        %s402 = ssub.s32 %s26, 1
        // Predicated region
        $region13: #{tpu_custom_call.1} parent=11 // pred_check
          %p403 = pneg %p64
        $region14: #{tpu_custom_call.1} parent=11 // pred_check_branch
          %405 = sbr.rel (%p403) target = $region16
        $region15: #{tpu_custom_call.1} parent=11 // pred_region
          %s406 = smul.u32 16, %s36
          %p407 = scmp.lt.s32.totalorder %s406, 15
          %s408 = scalar_select %p407, %s406, 15
          %s409 = smul.addr %s408, 8
          %s410 = scalar_lea.vmem %s0, %s409
          %s411 = smul.u32 16, %s36
        $region16: #{tpu_custom_call.1} parent=11 // pred_fallthru
          _
        // Predicated region
        $region17: #{tpu_custom_call.1} parent=11 // pred_check
          %p412 = pneg %p90
        $region18: #{tpu_custom_call.1} parent=11 // pred_check_branch
          %414 = sbr.rel (%p412) target = $region20
        $region19: #{tpu_custom_call.1} parent=11 // pred_region
          %p415 = scmp.lt.s32.totalorder %s36, 0
          %s416 = scalar_select %p415, %s36, 0
          %s417 = scalar_lea.vmem %s1, %s416
        $region20: #{tpu_custom_call.1} parent=11 // pred_fallthru
          _
        // Predicated region
        $region21: #{tpu_custom_call.1} parent=11 // pred_check
          %p418 = pneg %p111
        $region22: #{tpu_custom_call.1} parent=11 // pred_check_branch
          %420 = sbr.rel (%p418) target = $region24
        $region23: #{tpu_custom_call.1} parent=11 // pred_region
          _
        $region24: #{tpu_custom_call.1} parent=11 // pred_fallthru
          _
        // Predicated region
        $region25: #{tpu_custom_call.1} parent=11 // pred_check
          %p421 = pneg %p137
        $region26: #{tpu_custom_call.1} parent=11 // pred_check_branch
          %423 = sbr.rel (%p421) target = $region28
        $region27: #{tpu_custom_call.1} parent=11 // pred_region
          %s424 = smul.u32 16, %s36
          %s426 = ssub.s32 1024, 1024
          %427 = vsyncadd [#allocation5], %s426
          %s428 = smul.addr %s424, 64
          %s429 = scalar_lea.hbm %s3, %s428
          %s430 = sshll.u32 [#allocation4], 4
          %s431 = int_to_ptr.vmem [resolvable:$true] %s430
          %436 = dma.hbm_to_vmem [thread:$0]  %s429, 1024, %s431, [#allocation5], 64, 64, 4
        $region28: #{tpu_custom_call.1} parent=11 // pred_fallthru
          _
        // Predicated region
        $region29: #{tpu_custom_call.1} parent=11 // pred_check
          %p437 = pneg %p158
        $region30: #{tpu_custom_call.1} parent=11 // pred_check_branch
          %439 = sbr.rel (%p437) target = $region32
        $region31: #{tpu_custom_call.1} parent=11 // pred_region
          %s441 = ssub.s32 1024, 1024
          %442 = vsyncadd [#allocation8], %s441
          %s443 = sshll.u32 [#allocation7], 4
          %s444 = int_to_ptr.vmem [resolvable:$true] %s443
          %449 = dma.hbm_to_vmem [thread:$0]  %s4, 1024, %s444, [#allocation8], 64, 64, 4
        $region32: #{tpu_custom_call.1} parent=11 // pred_fallthru
          _
        // Predicated region
        $region33: #{tpu_custom_call.1} parent=11 // pred_check
          %p450 = pneg %p179
        $region34: #{tpu_custom_call.1} parent=11 // pred_check_branch
          %452 = sbr.rel (%p450) target = $region36
        $region35: #{tpu_custom_call.1} parent=11 // pred_region
          _
        $region36: #{tpu_custom_call.1} parent=11 // pred_fallthru
          _
        // Predicated region
        $region37: #{tpu_custom_call.1} parent=11 // pred_check
          %p453 = pneg %p200
        $region38: #{tpu_custom_call.1} parent=11 // pred_check_branch
          %455 = sbr.rel (%p453) target = $region40
        $region39: #{tpu_custom_call.1} parent=11 // pred_region
          %s457 = ssub.s32 1024, 1024
          %458 = vsyncadd [#allocation8], %s457
          %s459 = sshll.u32 [#allocation9], 4
          %s460 = int_to_ptr.vmem [resolvable:$true] %s459
          %465 = dma.hbm_to_vmem [thread:$0]  %s6, 1024, %s460, [#allocation8], 64, 64, 4
        $region40: #{tpu_custom_call.1} parent=11 // pred_fallthru
          _
        // Predicated region
        $region41: #{tpu_custom_call.1} parent=11 // pred_check
          %p466 = pneg %p221
        $region42: #{tpu_custom_call.1} parent=11 // pred_check_branch
          %468 = sbr.rel (%p466) target = $region44
        $region43: #{tpu_custom_call.1} parent=11 // pred_region
          _
        $region44: #{tpu_custom_call.1} parent=11 // pred_fallthru
          _
        // Predicated region
        $region45: #{tpu_custom_call.1} parent=11 // pred_check
          %p469 = pneg %p346
        $region46: #{tpu_custom_call.1} parent=11 // pred_check_branch
          %471 = sbr.rel (%p469) target = $region48
        $region47: #{tpu_custom_call.1} parent=11 // pred_region
          %s473 = ssub.s32 1024, 1024
          %474 = vsyncadd [#allocation11], %s473
          %s475 = sshll.u32 [#allocation12], 4
          %s476 = int_to_ptr.vmem [resolvable:$true] %s475
          %481 = dma.hbm_to_vmem [thread:$0]  %s12, 1024, %s476, [#allocation11], 64, 64, 4
        $region48: #{tpu_custom_call.1} parent=11 // pred_fallthru
          _
        // Predicated region
        $region49: #{tpu_custom_call.1} parent=11 // pred_check
          %p482 = pneg %p367
        $region50: #{tpu_custom_call.1} parent=11 // pred_check_branch
          %484 = sbr.rel (%p482) target = $region52
        $region51: #{tpu_custom_call.1} parent=11 // pred_region
          _
        $region52: #{tpu_custom_call.1} parent=11 // pred_fallthru
          _
      $region12: #{tpu_custom_call.1} parent=5 // pred_fallthru
        _
      %p485 = scmp.lt.s32.totalorder %s26, 2
      // Predicated region
      $region53: #{tpu_custom_call.1} parent=5 // pred_check
        %p486 = pneg %p485
      $region54: #{tpu_custom_call.1} parent=5 // pred_check_branch
        %488 = sbr.rel (%p486) target = $region56
      $region55: #{tpu_custom_call.1} parent=5 // pred_region
        // Predicated region
        $region57: #{tpu_custom_call.1} parent=55 // pred_check
          %p489 = pneg %p241
        $region58: #{tpu_custom_call.1} parent=55 // pred_check_branch
          %491 = sbr.rel (%p489) target = $region60
        $region59: #{tpu_custom_call.1} parent=55 // pred_region
          %p492 = scmp.lt.s32.totalorder %s33, 1
          %s493 = scalar_select %p492, %s33, 1
          %s494 = smul.addr %s493, 16
          %s495 = smul.addr %s494, 4
          %s496 = scalar_lea.vmem %s8, %s495
        $region60: #{tpu_custom_call.1} parent=55 // pred_fallthru
          _
        // Predicated region
        $region61: #{tpu_custom_call.1} parent=55 // pred_check
          %p497 = pneg %p267
        $region62: #{tpu_custom_call.1} parent=55 // pred_check_branch
          %499 = sbr.rel (%p497) target = $region64
        $region63: #{tpu_custom_call.1} parent=55 // pred_region
          %p500 = scmp.lt.s32.totalorder %s33, 1
          %s501 = scalar_select %p500, %s33, 1
          %s502 = scalar_lea.vmem %s9, %s501
        $region64: #{tpu_custom_call.1} parent=55 // pred_fallthru
          _
        // Predicated region
        $region65: #{tpu_custom_call.1} parent=55 // pred_check
          %p503 = pneg %p293
        $region66: #{tpu_custom_call.1} parent=55 // pred_check_branch
          %505 = sbr.rel (%p503) target = $region68
        $region67: #{tpu_custom_call.1} parent=55 // pred_region
          %s506 = sand.u32 %s26, 1
          %s507 = scalar_lea.sflag [#allocation11], %s506
          %s508 = sand.u32 %s283, 1
          %s509 = smul.addr %s508, 64
          %s510 = scalar_lea.vmem [#allocation10], %s509
          %s512 = ssub.s32 1024, 1024
          %513 = vsyncadd %s507, %s512
          %s514 = smul.addr %s33, 16
          %s515 = smul.addr %s514, 64
          %s516 = scalar_lea.hbm %s10, %s515
          %s517 = sshll.u32 %s510, 4
          %s518 = int_to_ptr.vmem [resolvable:$true] %s517
          %523 = dma.hbm_to_vmem [thread:$0]  %s516, 1024, %s518, %s507, 64, 64, 4
        $region68: #{tpu_custom_call.1} parent=55 // pred_fallthru
          _
        // Predicated region
        $region69: #{tpu_custom_call.1} parent=55 // pred_check
          %p524 = pneg %p319
        $region70: #{tpu_custom_call.1} parent=55 // pred_check_branch
          %526 = sbr.rel (%p524) target = $region72
        $region71: #{tpu_custom_call.1} parent=55 // pred_region
          %p527 = scmp.lt.s32.totalorder %s33, 1
          %s528 = scalar_select %p527, %s33, 1
          %s529 = scalar_lea.vmem %s11, %s528
        $region72: #{tpu_custom_call.1} parent=55 // pred_fallthru
          _
      $region56: #{tpu_custom_call.1} parent=5 // pred_fallthru
        _
      %p530 = scmp.le.s32.totalorder 1, %s26
      %p531 = scmp.lt.s32.totalorder %s26, 3
      %p532 = pnand %p530, %p531
      %p533 = pneg %p532
      // Predicated region
      $region73: #{tpu_custom_call.1} parent=5 // pred_check
        _
      $region74: #{tpu_custom_call.1} parent=5 // pred_check_branch
        %535 = sbr.rel (%p532) target = $region76
      $region75: #{tpu_custom_call.1} parent=5 // pred_region
        %s536 = ssub.s32 %s26, 1
        // Predicated region
        $region77: #{tpu_custom_call.1} parent=75 // pred_check
          %p537 = pneg %p137
        $region78: #{tpu_custom_call.1} parent=75 // pred_check_branch
          %539 = sbr.rel (%p537) target = $region80
        $region79: #{tpu_custom_call.1} parent=75 // pred_region
          %540 = dma.done [#allocation5], 1024
        $region80: #{tpu_custom_call.1} parent=75 // pred_fallthru
          _
        // Predicated region
        $region81: #{tpu_custom_call.1} parent=75 // pred_check
          %p541 = pneg %p158
        $region82: #{tpu_custom_call.1} parent=75 // pred_check_branch
          %543 = sbr.rel (%p541) target = $region84
        $region83: #{tpu_custom_call.1} parent=75 // pred_region
          %544 = dma.done [#allocation8], 1024
        $region84: #{tpu_custom_call.1} parent=75 // pred_fallthru
          _
        // Predicated region
        $region85: #{tpu_custom_call.1} parent=75 // pred_check
          %p545 = pneg %p200
        $region86: #{tpu_custom_call.1} parent=75 // pred_check_branch
          %547 = sbr.rel (%p545) target = $region88
        $region87: #{tpu_custom_call.1} parent=75 // pred_region
          %548 = dma.done [#allocation8], 1024
        $region88: #{tpu_custom_call.1} parent=75 // pred_fallthru
          _
        %s549 = sand.u32 %s31, 1
        %s550 = scalar_lea.sflag [#allocation11], %s549
        %s551 = sand.u32 %s286, 1
        %s552 = smul.addr %s551, 64
        %s553 = scalar_lea.vmem [#allocation10], %s552
        // Predicated region
        $region89: #{tpu_custom_call.1} parent=75 // pred_check
          %p554 = pneg %p299
        $region90: #{tpu_custom_call.1} parent=75 // pred_check_branch
          %556 = sbr.rel (%p554) target = $region92
        $region91: #{tpu_custom_call.1} parent=75 // pred_region
          %557 = dma.done %s550, 1024
        $region92: #{tpu_custom_call.1} parent=75 // pred_fallthru
          _
        // Predicated region
        $region93: #{tpu_custom_call.1} parent=75 // pred_check
          %p558 = pneg %p346
        $region94: #{tpu_custom_call.1} parent=75 // pred_check_branch
          %560 = sbr.rel (%p558) target = $region96
        $region95: #{tpu_custom_call.1} parent=75 // pred_region
          %561 = dma.done [#allocation11], 1024
        $region96: #{tpu_custom_call.1} parent=75 // pred_fallthru
          _
        %s562 = smul.u32 16, %s36
        %p563 = scmp.lt.s32.totalorder %s562, 15
        %s564 = scalar_select %p563, %s562, 15
        %s565 = smul.addr %s564, 8
        %s566 = scalar_lea.vmem %s0, %s565
        %p567 = pneg %p64
        %p568 = pneg %p61
        %p569 = scmp.lt.s32.totalorder %s36, 0
        %s570 = scalar_select %p569, %s36, 0
        %s571 = scalar_lea.vmem %s1, %s570
        %p572 = pneg %p90
        %p573 = pneg %p87
        %p574 = pneg %p111
        %p575 = pneg %p108
        %p576 = pneg %p137
        %p577 = pneg %p134
        %p578 = pneg %p158
        %p579 = pneg %p155
        %p580 = pneg %p179
        %p581 = pneg %p176
        %p582 = pneg %p200
        %p583 = pneg %p197
        %p584 = pneg %p221
        %p585 = pneg %p218
        %p586 = scmp.lt.s32.totalorder %s35, 1
        %s587 = scalar_select %p586, %s35, 1
        %s588 = smul.addr %s587, 16
        %s589 = smul.addr %s588, 4
        %s590 = scalar_lea.vmem %s8, %s589
        %p591 = pneg %p247
        %p592 = pneg %p244
        %p593 = scmp.lt.s32.totalorder %s35, 1
        %s594 = scalar_select %p593, %s35, 1
        %s595 = scalar_lea.vmem %s9, %s594
        %p596 = pneg %p273
        %p597 = pneg %p270
        %s598 = sand.u32 %s31, 1
        %s599 = scalar_lea.sflag [#allocation11], %s598
        %s600 = sand.u32 %s286, 1
        %s601 = smul.addr %s600, 64
        %s602 = scalar_lea.vmem [#allocation10], %s601
        %p603 = pneg %p299
        %p604 = pneg %p296
        %p605 = scmp.lt.s32.totalorder %s35, 1
        %s606 = scalar_select %p605, %s35, 1
        %s607 = scalar_lea.vmem %s11, %s606
        %p608 = pneg %p325
        %p609 = pneg %p322
        %p610 = pneg %p346
        %p611 = pneg %p343
        %p612 = pneg %p367
        %p613 = pneg %p364
        %p614 = pneg %p388
        %p615 = pneg %p385
        %s616 = smul.u32 16, %s36
        %p617 = scmp.lt.s32.totalorder %s616, 15
        %s618 = scalar_select %p617, %s616, 15
        %s619 = smul.addr %s618, 8
        %s620 = scalar_lea.vmem %s0, %s619
        %s621 = smul.u32 16, %s36
        %p622 = scmp.lt.s32.totalorder %s36, 0
        %s623 = scalar_select %p622, %s36, 0
        %s624 = scalar_lea.vmem %s1, %s623
        %s625 = smul.u32 16, %s36
        %p626 = scmp.lt.s32.totalorder %s35, 1
        %s627 = scalar_select %p626, %s35, 1
        %s628 = smul.addr %s627, 16
        %s629 = smul.addr %s628, 4
        %s630 = scalar_lea.vmem %s8, %s629
        %p631 = scmp.lt.s32.totalorder %s35, 1
        %s632 = scalar_select %p631, %s35, 1
        %s633 = scalar_lea.vmem %s9, %s632
        %p634 = scmp.lt.s32.totalorder %s35, 1
        %s635 = scalar_select %p634, %s35, 1
        %s636 = scalar_lea.vmem %s11, %s635
        %p638 = scmp.eq.s32.totalorder %s35, 0
        %p639 = scmp.eq.s32.totalorder %s36, 0
        %p640 = pnand %p638, %p639
        %p641 = pneg %p640
        // Predicated region
        $region97: #{tpu_custom_call.1} parent=75 // pred_check
          _
        $region98: #{tpu_custom_call.1} parent=75 // pred_check_branch
          %643 = sbr.rel (%p640) target = $region100
        $region99: #{tpu_custom_call.1} parent=75 // pred_region
          %v644 = vld [vmem:[%s2] sm:$0xf]
          %v645 = vld [vmem:[%s2 + $0x4] sm:$0xf]
          %v646 = vld [vmem:[#allocation7] sm:$0xf]
          %v647 = vld [vmem:[#allocation7 + $0x4] sm:$0xf]
          %v648 = vld [vmem:[#allocation7 + $0x8] sm:$0xf]
          %v649 = vld [vmem:[#allocation7 + $0xc] sm:$0xf]
          %v650 = vld [vmem:[#allocation7 + $0x10] sm:$0xf]
          %v651 = vld [vmem:[#allocation7 + $0x14] sm:$0xf]
          %v652 = vld [vmem:[#allocation7 + $0x18] sm:$0xf]
          %v653 = vld [vmem:[#allocation7 + $0x1c] sm:$0xf]
          %v654 = vld [vmem:[#allocation7 + $0x20] sm:$0xf]
          %v655 = vld [vmem:[#allocation7 + $0x24] sm:$0xf]
          %v656 = vld [vmem:[#allocation7 + $0x28] sm:$0xf]
          %v657 = vld [vmem:[#allocation7 + $0x2c] sm:$0xf]
          %v658 = vld [vmem:[#allocation7 + $0x30] sm:$0xf]
          %v659 = vld [vmem:[#allocation7 + $0x34] sm:$0xf]
          %v660 = vld [vmem:[#allocation7 + $0x38] sm:$0xf]
          %v661 = vld [vmem:[#allocation7 + $0x3c] sm:$0xf]
          %v662 = vld [vmem:[%s5] sm:$0x1]
          %v664 = vlaneseq
          %v665 = vshrl.u32 %v664, 7
          %v666 = vsub.s32 0, %v665
          %v667 = vrot.slane %v662, %v666
          %v671 = vunpack.c.l.b16 %v644
          %v672 = vunpack.c.l.b16 %v645
          %v673 = vpack.c.b16 %v672, %v671
          %v691 = vunpack.c.l.b16 %v646
          %v692 = vunpack.c.l.b16 %v647
          %v693 = vunpack.c.l.b16 %v648
          %v694 = vunpack.c.l.b16 %v649
          %v695 = vunpack.c.l.b16 %v650
          %v696 = vunpack.c.l.b16 %v651
          %v697 = vunpack.c.l.b16 %v652
          %v698 = vunpack.c.l.b16 %v653
          %v699 = vunpack.c.l.b16 %v654
          %v700 = vunpack.c.l.b16 %v655
          %v701 = vunpack.c.l.b16 %v656
          %v702 = vunpack.c.l.b16 %v657
          %v703 = vunpack.c.l.b16 %v658
          %v704 = vunpack.c.l.b16 %v659
          %v705 = vunpack.c.l.b16 %v660
          %v706 = vunpack.c.l.b16 %v661
          %v707 = vpack.c.b16 %v692, %v691
          %v708 = vpack.c.b16 %v694, %v693
          %v709 = vpack.c.b16 %v696, %v695
          %v710 = vpack.c.b16 %v698, %v697
          %v711 = vpack.c.b16 %v700, %v699
          %v712 = vpack.c.b16 %v702, %v701
          %v713 = vpack.c.b16 %v704, %v703
          %v714 = vpack.c.b16 %v706, %v705
          %723 = vmatprep.subr.bf16.mxu0 0
          %724 = vmatpush1.bf16.msra.mxu0 %v714
          %725 = vmatprep.subr.bf16.mxu0 0
          %726 = vmatpush1.bf16.msra.mxu0 %v713
          %727 = vmatprep.subr.bf16.mxu0 0
          %728 = vmatpush1.bf16.msra.mxu0 %v712
          %729 = vmatprep.subr.bf16.mxu0 0
          %730 = vmatpush1.bf16.msra.mxu0 %v711
          %731 = vmatprep.subr.bf16.mxu0 0
          %732 = vmatpush1.bf16.msra.mxu0 %v710
          %733 = vmatprep.subr.bf16.mxu0 0
          %734 = vmatpush1.bf16.msra.mxu0 %v709
          %735 = vmatprep.subr.bf16.mxu0 0
          %736 = vmatpush1.bf16.msra.mxu0 %v708
          %737 = vmatprep.subr.bf16.mxu0 0
          %738 = vmatpush1.bf16.msra.mxu0 %v707
          %739 = vmatprep.subr.bf16.mxu0 0
          %740 = vmatpush2.bf16.msra.mxu0 0
          %741 = vmatprep.subr.bf16.mxu0 0
          %742 = vmatpush2.bf16.msra.mxu0 0
          %743 = vmatprep.subr.bf16.mxu0 0
          %744 = vmatpush2.bf16.msra.mxu0 0
          %745 = vmatprep.subr.bf16.mxu0 0
          %746 = vmatpush2.bf16.msra.mxu0 0
          %747 = vmatprep.subr.bf16.mxu0 0
          %748 = vmatpush2.bf16.msra.mxu0 0
          %749 = vmatprep.subr.bf16.mxu0 0
          %750 = vmatpush2.bf16.msra.mxu0 0
          %751 = vmatprep.subr.bf16.mxu0 0
          %752 = vmatpush2.bf16.msra.mxu0 0
          %753 = vmatprep.subr.bf16.mxu0 0
          %754 = vmatpush2.bf16.msra.mxu0 0
          %755 = vmatprep.mubr.bf16.mxu0 0
          %756 = vmatmul.mubr.bf16.gmra.mxu0 %v673
          %v757 = vpop.f32.mrf.mxu0
          %v758 = vadd.f32 %v667, %v757
          %v759 = vpop.f32.mrf.mxu0
          %v760 = vpop.f32.mrf.mxu0
          %v761 = vadd.f32 %v667, %v760
          %v762 = vpop.f32.mrf.mxu0
          %763 = vdwg.mxu0
          %764 = vst [vmem:[#allocation2] sm:$0xff] %v758
          %765 = vst [vmem:[#allocation2 + $0x8] sm:$0xff] %v761
        $region100: #{tpu_custom_call.1} parent=75 // pred_fallthru
          _
        // Predicated region
        $region101: #{tpu_custom_call.1} parent=75 // pred_check
          %p766 = pneg %p639
        $region102: #{tpu_custom_call.1} parent=75 // pred_check_branch
          %768 = sbr.rel (%p766) target = $region104
        $region103: #{tpu_custom_call.1} parent=75 // pred_region
          %769 = vst [vmem:[#allocation3] sm:$0xff] 0.0
          %770 = vst [vmem:[#allocation3 + $0x8] sm:$0xff] 0.0
        $region104: #{tpu_custom_call.1} parent=75 // pred_fallthru
          _
        %v771 = vld [vmem:[#allocation4] sm:$0xf]
        %v772 = vld [vmem:[#allocation4 + $0x4] sm:$0xf]
        %v773 = vld [vmem:[#allocation4 + $0x8] sm:$0xf]
        %v774 = vld [vmem:[#allocation4 + $0xc] sm:$0xf]
        %v775 = vld [vmem:[#allocation4 + $0x10] sm:$0xf]
        %v776 = vld [vmem:[#allocation4 + $0x14] sm:$0xf]
        %v777 = vld [vmem:[#allocation4 + $0x18] sm:$0xf]
        %v778 = vld [vmem:[#allocation4 + $0x1c] sm:$0xf]
        %v779 = vld [vmem:[#allocation4 + $0x20] sm:$0xf]
        %v780 = vld [vmem:[#allocation4 + $0x24] sm:$0xf]
        %v781 = vld [vmem:[#allocation4 + $0x28] sm:$0xf]
        %v782 = vld [vmem:[#allocation4 + $0x2c] sm:$0xf]
        %v783 = vld [vmem:[#allocation4 + $0x30] sm:$0xf]
        %v784 = vld [vmem:[#allocation4 + $0x34] sm:$0xf]
        %v785 = vld [vmem:[#allocation4 + $0x38] sm:$0xf]
        %v786 = vld [vmem:[#allocation4 + $0x3c] sm:$0xf]
        %v787 = vld [vmem:[#allocation9] sm:$0xf]
        %v788 = vld [vmem:[#allocation9 + $0x4] sm:$0xf]
        %v789 = vld [vmem:[#allocation9 + $0x8] sm:$0xf]
        %v790 = vld [vmem:[#allocation9 + $0xc] sm:$0xf]
        %v791 = vld [vmem:[#allocation9 + $0x10] sm:$0xf]
        %v792 = vld [vmem:[#allocation9 + $0x14] sm:$0xf]
        %v793 = vld [vmem:[#allocation9 + $0x18] sm:$0xf]
        %v794 = vld [vmem:[#allocation9 + $0x1c] sm:$0xf]
        %v795 = vld [vmem:[#allocation9 + $0x20] sm:$0xf]
        %v796 = vld [vmem:[#allocation9 + $0x24] sm:$0xf]
        %v797 = vld [vmem:[#allocation9 + $0x28] sm:$0xf]
        %v798 = vld [vmem:[#allocation9 + $0x2c] sm:$0xf]
        %v799 = vld [vmem:[#allocation9 + $0x30] sm:$0xf]
        %v800 = vld [vmem:[#allocation9 + $0x34] sm:$0xf]
        %v801 = vld [vmem:[#allocation9 + $0x38] sm:$0xf]
        %v802 = vld [vmem:[#allocation9 + $0x3c] sm:$0xf]
        %v803 = vld [vmem:[%s7] sm:$0x1]
        %v805 = vlaneseq
        %v806 = vshrl.u32 %v805, 7
        %v807 = vsub.s32 0, %v806
        %v808 = vrot.slane %v803, %v807
        %v826 = vunpack.c.l.b16 %v771
        %v827 = vunpack.c.l.b16 %v772
        %v828 = vunpack.c.l.b16 %v773
        %v829 = vunpack.c.l.b16 %v774
        %v830 = vunpack.c.l.b16 %v775
        %v831 = vunpack.c.l.b16 %v776
        %v832 = vunpack.c.l.b16 %v777
        %v833 = vunpack.c.l.b16 %v778
        %v834 = vunpack.c.l.b16 %v779
        %v835 = vunpack.c.l.b16 %v780
        %v836 = vunpack.c.l.b16 %v781
        %v837 = vunpack.c.l.b16 %v782
        %v838 = vunpack.c.l.b16 %v783
        %v839 = vunpack.c.l.b16 %v784
        %v840 = vunpack.c.l.b16 %v785
        %v841 = vunpack.c.l.b16 %v786
        %v842 = vpack.c.b16 %v827, %v826
        %v843 = vpack.c.b16 %v829, %v828
        %v844 = vpack.c.b16 %v831, %v830
        %v845 = vpack.c.b16 %v833, %v832
        %v846 = vpack.c.b16 %v835, %v834
        %v847 = vpack.c.b16 %v837, %v836
        %v848 = vpack.c.b16 %v839, %v838
        %v849 = vpack.c.b16 %v841, %v840
        %v874 = vunpack.c.l.b16 %v787
        %v875 = vunpack.c.l.b16 %v788
        %v876 = vunpack.c.l.b16 %v789
        %v877 = vunpack.c.l.b16 %v790
        %v878 = vunpack.c.l.b16 %v791
        %v879 = vunpack.c.l.b16 %v792
        %v880 = vunpack.c.l.b16 %v793
        %v881 = vunpack.c.l.b16 %v794
        %v882 = vunpack.c.l.b16 %v795
        %v883 = vunpack.c.l.b16 %v796
        %v884 = vunpack.c.l.b16 %v797
        %v885 = vunpack.c.l.b16 %v798
        %v886 = vunpack.c.l.b16 %v799
        %v887 = vunpack.c.l.b16 %v800
        %v888 = vunpack.c.l.b16 %v801
        %v889 = vunpack.c.l.b16 %v802
        %v890 = vpack.c.b16 %v875, %v874
        %v891 = vpack.c.b16 %v877, %v876
        %v892 = vpack.c.b16 %v879, %v878
        %v893 = vpack.c.b16 %v881, %v880
        %v894 = vpack.c.b16 %v883, %v882
        %v895 = vpack.c.b16 %v885, %v884
        %v896 = vpack.c.b16 %v887, %v886
        %v897 = vpack.c.b16 %v889, %v888
        %906 = vmatprep.subr.bf16.mxu0 0
        %907 = vmatpush1.bf16.msra.mxu0 %v897
        %908 = vmatprep.subr.bf16.mxu0 0
        %909 = vmatpush1.bf16.msra.mxu0 %v896
        %910 = vmatprep.subr.bf16.mxu0 0
        %911 = vmatpush1.bf16.msra.mxu0 %v895
        %912 = vmatprep.subr.bf16.mxu0 0
        %913 = vmatpush1.bf16.msra.mxu0 %v894
        %914 = vmatprep.subr.bf16.mxu0 0
        %915 = vmatpush1.bf16.msra.mxu0 %v893
        %916 = vmatprep.subr.bf16.mxu0 0
        %917 = vmatpush1.bf16.msra.mxu0 %v892
        %918 = vmatprep.subr.bf16.mxu0 0
        %919 = vmatpush1.bf16.msra.mxu0 %v891
        %920 = vmatprep.subr.bf16.mxu0 0
        %921 = vmatpush1.bf16.msra.mxu0 %v890
        %922 = vmatprep.subr.bf16.mxu0 0
        %923 = vmatpush2.bf16.msra.mxu0 0
        %924 = vmatprep.subr.bf16.mxu0 0
        %925 = vmatpush2.bf16.msra.mxu0 0
        %926 = vmatprep.subr.bf16.mxu0 0
        %927 = vmatpush2.bf16.msra.mxu0 0
        %928 = vmatprep.subr.bf16.mxu0 0
        %929 = vmatpush2.bf16.msra.mxu0 0
        %930 = vmatprep.subr.bf16.mxu0 0
        %931 = vmatpush2.bf16.msra.mxu0 0
        %932 = vmatprep.subr.bf16.mxu0 0
        %933 = vmatpush2.bf16.msra.mxu0 0
        %934 = vmatprep.subr.bf16.mxu0 0
        %935 = vmatpush2.bf16.msra.mxu0 0
        %936 = vmatprep.subr.bf16.mxu0 0
        %937 = vmatpush2.bf16.msra.mxu0 0
        %938 = vmatprep.mubr.bf16.mxu0 0
        %939 = vmatmul.mubr.bf16.gmra.mxu0 %v842
        %v940 = vpop.f32.mrf.mxu0
        %v941 = vadd.f32 %v808, %v940
        %v942 = vpop.f32.mrf.mxu0
        %v943 = vpop.f32.mrf.mxu0
        %v944 = vadd.f32 %v808, %v943
        %v945 = vpop.f32.mrf.mxu0
        %946 = vmatprep.mubr.bf16.mxu0 0
        %947 = vmatmul.mubr.bf16.gmra.mxu0 %v843
        %v948 = vpop.f32.mrf.mxu0
        %v949 = vadd.f32 %v808, %v948
        %v950 = vpop.f32.mrf.mxu0
        %v951 = vpop.f32.mrf.mxu0
        %v952 = vadd.f32 %v808, %v951
        %v953 = vpop.f32.mrf.mxu0
        %954 = vmatprep.mubr.bf16.mxu0 0
        %955 = vmatmul.mubr.bf16.gmra.mxu0 %v844
        %v956 = vpop.f32.mrf.mxu0
        %v957 = vadd.f32 %v808, %v956
        %v958 = vpop.f32.mrf.mxu0
        %v959 = vpop.f32.mrf.mxu0
        %v960 = vadd.f32 %v808, %v959
        %v961 = vpop.f32.mrf.mxu0
        %962 = vmatprep.mubr.bf16.mxu0 0
        %963 = vmatmul.mubr.bf16.gmra.mxu0 %v845
        %v964 = vpop.f32.mrf.mxu0
        %v965 = vadd.f32 %v808, %v964
        %v966 = vpop.f32.mrf.mxu0
        %v967 = vpop.f32.mrf.mxu0
        %v968 = vadd.f32 %v808, %v967
        %v969 = vpop.f32.mrf.mxu0
        %970 = vmatprep.mubr.bf16.mxu0 0
        %971 = vmatmul.mubr.bf16.gmra.mxu0 %v846
        %v972 = vpop.f32.mrf.mxu0
        %v973 = vadd.f32 %v808, %v972
        %v974 = vpop.f32.mrf.mxu0
        %v975 = vpop.f32.mrf.mxu0
        %v976 = vadd.f32 %v808, %v975
        %v977 = vpop.f32.mrf.mxu0
        %978 = vmatprep.mubr.bf16.mxu0 0
        %979 = vmatmul.mubr.bf16.gmra.mxu0 %v847
        %v980 = vpop.f32.mrf.mxu0
        %v981 = vadd.f32 %v808, %v980
        %v982 = vpop.f32.mrf.mxu0
        %v983 = vpop.f32.mrf.mxu0
        %v984 = vadd.f32 %v808, %v983
        %v985 = vpop.f32.mrf.mxu0
        %986 = vmatprep.mubr.bf16.mxu0 0
        %987 = vmatmul.mubr.bf16.gmra.mxu0 %v848
        %v988 = vpop.f32.mrf.mxu0
        %v989 = vadd.f32 %v808, %v988
        %v990 = vpop.f32.mrf.mxu0
        %v991 = vpop.f32.mrf.mxu0
        %v992 = vadd.f32 %v808, %v991
        %v993 = vpop.f32.mrf.mxu0
        %994 = vmatprep.mubr.bf16.mxu0 0
        %995 = vmatmul.mubr.bf16.gmra.mxu0 %v849
        %v996 = vpop.f32.mrf.mxu0
        %v997 = vadd.f32 %v808, %v996
        %v998 = vpop.f32.mrf.mxu0
        %v999 = vpop.f32.mrf.mxu0
        %v1000 = vadd.f32 %v808, %v999
        %v1001 = vpop.f32.mrf.mxu0
        %1002 = vdwg.mxu0
        %v1003 = vld [vmem:[#allocation2] sm:$0xff]
        %v1004 = vld [vmem:[#allocation2 + $0x8] sm:$0xff]
        %v1005 = vpack.c.bf16 %v1004, %v1003
        %v1006 = vld [vmem:[%s620] sm:$0xff]
        %v1007 = vld [vmem:[%s620 + $0x8] sm:$0xff]
        %v1008 = vld [vmem:[%s620 + $0x10] sm:$0xff]
        %v1009 = vld [vmem:[%s620 + $0x18] sm:$0xff]
        %v1010 = vld [vmem:[%s620 + $0x20] sm:$0xff]
        %v1011 = vld [vmem:[%s620 + $0x28] sm:$0xff]
        %v1012 = vld [vmem:[%s620 + $0x30] sm:$0xff]
        %v1013 = vld [vmem:[%s620 + $0x38] sm:$0xff]
        %v1014 = vld [vmem:[%s620 + $0x40] sm:$0xff]
        %v1015 = vld [vmem:[%s620 + $0x48] sm:$0xff]
        %v1016 = vld [vmem:[%s620 + $0x50] sm:$0xff]
        %v1017 = vld [vmem:[%s620 + $0x58] sm:$0xff]
        %v1018 = vld [vmem:[%s620 + $0x60] sm:$0xff]
        %v1019 = vld [vmem:[%s620 + $0x68] sm:$0xff]
        %v1020 = vld [vmem:[%s620 + $0x70] sm:$0xff]
        %v1021 = vld [vmem:[%s620 + $0x78] sm:$0xff]
        %v1022 = vld [vmem:[%s624] sm:$0x1]
        %v1023 = vlaneseq
        %v1024 = vand.u32 %v1023, 127
        %1025 = vset.pattern.permute.xlu0 0
        %1026 = vperm.xlu0 %1025, %v1006
        %v1027 = vpop.permute.xlu0 %1026
        %1028 = vset.pattern.permute.xlu0 0
        %1029 = vperm.xlu0 %1028, %v1007
        %v1030 = vpop.permute.xlu0 %1029
        %1031 = vset.pattern.permute.xlu0 0
        %1032 = vperm.xlu0 %1031, %v1008
        %v1033 = vpop.permute.xlu0 %1032
        %1034 = vset.pattern.permute.xlu0 0
        %1035 = vperm.xlu0 %1034, %v1009
        %v1036 = vpop.permute.xlu0 %1035
        %1037 = vset.pattern.permute.xlu0 0
        %1038 = vperm.xlu0 %1037, %v1010
        %v1039 = vpop.permute.xlu0 %1038
        %1040 = vset.pattern.permute.xlu0 0
        %1041 = vperm.xlu0 %1040, %v1011
        %v1042 = vpop.permute.xlu0 %1041
        %1043 = vset.pattern.permute.xlu0 0
        %1044 = vperm.xlu0 %1043, %v1012
        %v1045 = vpop.permute.xlu0 %1044
        %1046 = vset.pattern.permute.xlu0 0
        %1047 = vperm.xlu0 %1046, %v1013
        %v1048 = vpop.permute.xlu0 %1047
        %1049 = vset.pattern.permute.xlu0 0
        %1050 = vperm.xlu0 %1049, %v1014
        %v1051 = vpop.permute.xlu0 %1050
        %1052 = vset.pattern.permute.xlu0 0
        %1053 = vperm.xlu0 %1052, %v1015
        %v1054 = vpop.permute.xlu0 %1053
        %1055 = vset.pattern.permute.xlu0 0
        %1056 = vperm.xlu0 %1055, %v1016
        %v1057 = vpop.permute.xlu0 %1056
        %1058 = vset.pattern.permute.xlu0 0
        %1059 = vperm.xlu0 %1058, %v1017
        %v1060 = vpop.permute.xlu0 %1059
        %1061 = vset.pattern.permute.xlu0 0
        %1062 = vperm.xlu0 %1061, %v1018
        %v1063 = vpop.permute.xlu0 %1062
        %1064 = vset.pattern.permute.xlu0 0
        %1065 = vperm.xlu0 %1064, %v1019
        %v1066 = vpop.permute.xlu0 %1065
        %1067 = vset.pattern.permute.xlu0 0
        %1068 = vperm.xlu0 %1067, %v1020
        %v1069 = vpop.permute.xlu0 %1068
        %1070 = vset.pattern.permute.xlu0 0
        %1071 = vperm.xlu0 %1070, %v1021
        %v1072 = vpop.permute.xlu0 %1071
        %vm1073 = vcmp.eq.s32.totalorder %v1024, %v1027
        %vm1074 = vcmp.eq.s32.totalorder %v1024, %v1030
        %vm1075 = vcmp.eq.s32.totalorder %v1024, %v1033
        %vm1076 = vcmp.eq.s32.totalorder %v1024, %v1036
        %vm1077 = vcmp.eq.s32.totalorder %v1024, %v1039
        %vm1078 = vcmp.eq.s32.totalorder %v1024, %v1042
        %vm1079 = vcmp.eq.s32.totalorder %v1024, %v1045
        %vm1080 = vcmp.eq.s32.totalorder %v1024, %v1048
        %vm1081 = vcmp.eq.s32.totalorder %v1024, %v1051
        %vm1082 = vcmp.eq.s32.totalorder %v1024, %v1054
        %vm1083 = vcmp.eq.s32.totalorder %v1024, %v1057
        %vm1084 = vcmp.eq.s32.totalorder %v1024, %v1060
        %vm1085 = vcmp.eq.s32.totalorder %v1024, %v1063
        %vm1086 = vcmp.eq.s32.totalorder %v1024, %v1066
        %vm1087 = vcmp.eq.s32.totalorder %v1024, %v1069
        %vm1088 = vcmp.eq.s32.totalorder %v1024, %v1072
        %v1089 = vsel %vm1073, 1.0, 0.0
        %v1090 = vsel %vm1074, 1.0, 0.0
        %v1091 = vsel %vm1075, 1.0, 0.0
        %v1092 = vsel %vm1076, 1.0, 0.0
        %v1093 = vsel %vm1077, 1.0, 0.0
        %v1094 = vsel %vm1078, 1.0, 0.0
        %v1095 = vsel %vm1079, 1.0, 0.0
        %v1096 = vsel %vm1080, 1.0, 0.0
        %v1097 = vsel %vm1081, 1.0, 0.0
        %v1098 = vsel %vm1082, 1.0, 0.0
        %v1099 = vsel %vm1083, 1.0, 0.0
        %v1100 = vsel %vm1084, 1.0, 0.0
        %v1101 = vsel %vm1085, 1.0, 0.0
        %v1102 = vsel %vm1086, 1.0, 0.0
        %v1103 = vsel %vm1087, 1.0, 0.0
        %v1104 = vsel %vm1088, 1.0, 0.0
        %v1105 = vpack.c.bf16 %v1090, %v1089
        %v1106 = vpack.c.bf16 %v1092, %v1091
        %v1107 = vpack.c.bf16 %v1094, %v1093
        %v1108 = vpack.c.bf16 %v1096, %v1095
        %v1109 = vpack.c.bf16 %v1098, %v1097
        %v1110 = vpack.c.bf16 %v1100, %v1099
        %v1111 = vpack.c.bf16 %v1102, %v1101
        %v1112 = vpack.c.bf16 %v1104, %v1103
        %v1113 = vlaneseq
        %v1114 = vshrl.u32 %v1113, 7
        %v1115 = vadd.s32 %v1114, 8
        %v1116 = vlaneseq
        %v1117 = vshrl.u32 %v1116, 7
        %v1118 = vsub.s32 0, %v1117
        %v1119 = vrot.slane %v1022, %v1118
        %vm1120 = vcmp.eq.s32.totalorder %v1114, %v1119
        %vm1121 = vcmp.eq.s32.totalorder %v1115, %v1119
        %v1122 = vsel %vm1120, 1.0, 0.0
        %v1123 = vsel %vm1121, 1.0, 0.0
        %v1124 = vpack.c.bf16 %v1123, %v1122
        %vm1125 = vcmask 130048
        %v1127 = vsel %vm1125, %v1105, 0
        %v1130 = vsel %vm1125, %v1106, 0
        %v1133 = vsel %vm1125, %v1107, 0
        %v1136 = vsel %vm1125, %v1108, 0
        %v1139 = vsel %vm1125, %v1109, 0
        %v1142 = vsel %vm1125, %v1110, 0
        %v1145 = vsel %vm1125, %v1111, 0
        %v1148 = vsel %vm1125, %v1112, 0
        %1150 = vmatprep.subr.bf16.mxu0 0
        %1151 = vmatpush1.bf16.msra.mxu0 0
        %1152 = vmatprep.subr.bf16.mxu0 0
        %1153 = vmatpush1.bf16.msra.mxu0 0
        %1154 = vmatprep.subr.bf16.mxu0 0
        %1155 = vmatpush1.bf16.msra.mxu0 0
        %1156 = vmatprep.subr.bf16.mxu0 0
        %1157 = vmatpush1.bf16.msra.mxu0 0
        %1158 = vmatprep.subr.bf16.mxu0 0
        %1159 = vmatpush1.bf16.msra.mxu0 0
        %1160 = vmatprep.subr.bf16.mxu0 0
        %1161 = vmatpush1.bf16.msra.mxu0 0
        %1162 = vmatprep.subr.bf16.mxu0 0
        %1163 = vmatpush1.bf16.msra.mxu0 0
        %1164 = vmatprep.subr.bf16.mxu0 0
        %1165 = vmatpush1.bf16.msra.mxu0 %v1005
        %1166 = vmatprep.subr.bf16.mxu0 0
        %1167 = vmatpush2.bf16.msra.mxu0 0
        %1168 = vmatprep.subr.bf16.mxu0 0
        %1169 = vmatpush2.bf16.msra.mxu0 0
        %1170 = vmatprep.subr.bf16.mxu0 0
        %1171 = vmatpush2.bf16.msra.mxu0 0
        %1172 = vmatprep.subr.bf16.mxu0 0
        %1173 = vmatpush2.bf16.msra.mxu0 0
        %1174 = vmatprep.subr.bf16.mxu0 0
        %1175 = vmatpush2.bf16.msra.mxu0 0
        %1176 = vmatprep.subr.bf16.mxu0 0
        %1177 = vmatpush2.bf16.msra.mxu0 0
        %1178 = vmatprep.subr.bf16.mxu0 0
        %1179 = vmatpush2.bf16.msra.mxu0 0
        %1180 = vmatprep.subr.bf16.mxu0 0
        %1181 = vmatpush2.bf16.msra.mxu0 0
        %1182 = vmatprep.mubr.bf16.mxu0 0
        %1183 = vmatmul.mubr.bf16.gmra.mxu0 %v1127
        %v1184 = vpop.f32.mrf.mxu0
        %v1185 = vadd.f32 %v941, %v1184
        %v1186 = vpop.f32.mrf.mxu0
        %v1187 = vpop.f32.mrf.mxu0
        %v1188 = vadd.f32 %v944, %v1187
        %v1189 = vpop.f32.mrf.mxu0
        %1190 = vmatprep.mubr.bf16.mxu0 0
        %1191 = vmatmul.mubr.bf16.gmra.mxu0 %v1130
        %v1192 = vpop.f32.mrf.mxu0
        %v1193 = vadd.f32 %v949, %v1192
        %v1194 = vpop.f32.mrf.mxu0
        %v1195 = vpop.f32.mrf.mxu0
        %v1196 = vadd.f32 %v952, %v1195
        %v1197 = vpop.f32.mrf.mxu0
        %1198 = vmatprep.mubr.bf16.mxu0 0
        %1199 = vmatmul.mubr.bf16.gmra.mxu0 %v1133
        %v1200 = vpop.f32.mrf.mxu0
        %v1201 = vadd.f32 %v957, %v1200
        %v1202 = vpop.f32.mrf.mxu0
        %v1203 = vpop.f32.mrf.mxu0
        %v1204 = vadd.f32 %v960, %v1203
        %v1205 = vpop.f32.mrf.mxu0
        %1206 = vmatprep.mubr.bf16.mxu0 0
        %1207 = vmatmul.mubr.bf16.gmra.mxu0 %v1136
        %v1208 = vpop.f32.mrf.mxu0
        %v1209 = vadd.f32 %v965, %v1208
        %v1210 = vpop.f32.mrf.mxu0
        %v1211 = vpop.f32.mrf.mxu0
        %v1212 = vadd.f32 %v968, %v1211
        %v1213 = vpop.f32.mrf.mxu0
        %1214 = vmatprep.mubr.bf16.mxu0 0
        %1215 = vmatmul.mubr.bf16.gmra.mxu0 %v1139
        %v1216 = vpop.f32.mrf.mxu0
        %v1217 = vadd.f32 %v973, %v1216
        %v1218 = vpop.f32.mrf.mxu0
        %v1219 = vpop.f32.mrf.mxu0
        %v1220 = vadd.f32 %v976, %v1219
        %v1221 = vpop.f32.mrf.mxu0
        %1222 = vmatprep.mubr.bf16.mxu0 0
        %1223 = vmatmul.mubr.bf16.gmra.mxu0 %v1142
        %v1224 = vpop.f32.mrf.mxu0
        %v1225 = vadd.f32 %v981, %v1224
        %v1226 = vpop.f32.mrf.mxu0
        %v1227 = vpop.f32.mrf.mxu0
        %v1228 = vadd.f32 %v984, %v1227
        %v1229 = vpop.f32.mrf.mxu0
        %1230 = vmatprep.mubr.bf16.mxu0 0
        %1231 = vmatmul.mubr.bf16.gmra.mxu0 %v1145
        %v1232 = vpop.f32.mrf.mxu0
        %v1233 = vadd.f32 %v989, %v1232
        %v1234 = vpop.f32.mrf.mxu0
        %v1235 = vpop.f32.mrf.mxu0
        %v1236 = vadd.f32 %v992, %v1235
        %v1237 = vpop.f32.mrf.mxu0
        %1238 = vmatprep.mubr.bf16.mxu0 0
        %1239 = vmatmul.mubr.bf16.gmra.mxu0 %v1148
        %v1240 = vpop.f32.mrf.mxu0
        %v1241 = vadd.f32 %v997, %v1240
        %v1242 = vpop.f32.mrf.mxu0
        %v1243 = vpop.f32.mrf.mxu0
        %v1244 = vadd.f32 %v1000, %v1243
        %v1245 = vpop.f32.mrf.mxu0
        %1246 = vdwg.mxu0
        %v1247 = vmax.f32 %v1185, 0.0
        %v1248 = vmax.f32 %v1188, 0.0
        %v1249 = vmax.f32 %v1193, 0.0
        %v1250 = vmax.f32 %v1196, 0.0
        %v1251 = vmax.f32 %v1201, 0.0
        %v1252 = vmax.f32 %v1204, 0.0
        %v1253 = vmax.f32 %v1209, 0.0
        %v1254 = vmax.f32 %v1212, 0.0
        %v1255 = vmax.f32 %v1217, 0.0
        %v1256 = vmax.f32 %v1220, 0.0
        %v1257 = vmax.f32 %v1225, 0.0
        %v1258 = vmax.f32 %v1228, 0.0
        %v1259 = vmax.f32 %v1233, 0.0
        %v1260 = vmax.f32 %v1236, 0.0
        %v1261 = vmax.f32 %v1241, 0.0
        %v1262 = vmax.f32 %v1244, 0.0
        %v1263 = vpack.c.bf16 %v1248, %v1247
        %v1264 = vpack.c.bf16 %v1250, %v1249
        %v1265 = vpack.c.bf16 %v1252, %v1251
        %v1266 = vpack.c.bf16 %v1254, %v1253
        %v1267 = vpack.c.bf16 %v1256, %v1255
        %v1268 = vpack.c.bf16 %v1258, %v1257
        %v1269 = vpack.c.bf16 %v1260, %v1259
        %v1270 = vpack.c.bf16 %v1262, %v1261
        %v1271 = vld [vmem:[#allocation3] sm:$0xff]
        %v1272 = vld [vmem:[#allocation3 + $0x8] sm:$0xff]
        %1273 = vmatprep.subr.bf16.mxu0 0
        %1274 = vmatpush1.bf16.msra.mxu0 %v1270
        %1275 = vmatprep.subr.bf16.mxu0 0
        %1276 = vmatpush1.bf16.msra.mxu0 %v1269
        %1277 = vmatprep.subr.bf16.mxu0 0
        %1278 = vmatpush1.bf16.msra.mxu0 %v1268
        %1279 = vmatprep.subr.bf16.mxu0 0
        %1280 = vmatpush1.bf16.msra.mxu0 %v1267
        %1281 = vmatprep.subr.bf16.mxu0 0
        %1282 = vmatpush1.bf16.msra.mxu0 %v1266
        %1283 = vmatprep.subr.bf16.mxu0 0
        %1284 = vmatpush1.bf16.msra.mxu0 %v1265
        %1285 = vmatprep.subr.bf16.mxu0 0
        %1286 = vmatpush1.bf16.msra.mxu0 %v1264
        %1287 = vmatprep.subr.bf16.mxu0 0
        %1288 = vmatpush1.bf16.msra.mxu0 %v1263
        %1289 = vmatprep.subr.bf16.mxu0 0
        %1290 = vmatpush2.bf16.msra.mxu0 0
        %1291 = vmatprep.subr.bf16.mxu0 0
        %1292 = vmatpush2.bf16.msra.mxu0 0
        %1293 = vmatprep.subr.bf16.mxu0 0
        %1294 = vmatpush2.bf16.msra.mxu0 0
        %1295 = vmatprep.subr.bf16.mxu0 0
        %1296 = vmatpush2.bf16.msra.mxu0 0
        %1297 = vmatprep.subr.bf16.mxu0 0
        %1298 = vmatpush2.bf16.msra.mxu0 0
        %1299 = vmatprep.subr.bf16.mxu0 0
        %1300 = vmatpush2.bf16.msra.mxu0 0
        %1301 = vmatprep.subr.bf16.mxu0 0
        %1302 = vmatpush2.bf16.msra.mxu0 0
        %1303 = vmatprep.subr.bf16.mxu0 0
        %1304 = vmatpush2.bf16.msra.mxu0 0
        %1305 = vmatprep.mubr.bf16.mxu0 0
        %1306 = vmatmul.mubr.bf16.gmra.mxu0 %v1124
        %v1307 = vpop.f32.mrf.mxu0
        %v1308 = vadd.f32 0.0, %v1307
        %v1309 = vpop.f32.mrf.mxu0
        %v1310 = vpop.f32.mrf.mxu0
        %v1311 = vadd.f32 0.0, %v1310
        %v1312 = vpop.f32.mrf.mxu0
        %1313 = vdwg.mxu0
        %v1314 = vadd.f32 %v1271, %v1308
        %v1315 = vadd.f32 %v1272, %v1311
        %1316 = vst [vmem:[#allocation3] sm:$0xff] %v1314
        %1317 = vst [vmem:[#allocation3 + $0x8] sm:$0xff] %v1315
        // Predicated region
        $region105: #{tpu_custom_call.1} parent=75 // pred_check
          %p1318 = pneg %p639
        $region106: #{tpu_custom_call.1} parent=75 // pred_check_branch
          %1320 = sbr.rel (%p1318) target = $region108
        $region107: #{tpu_custom_call.1} parent=75 // pred_region
          %v1321 = vld [vmem:[#allocation2] sm:$0xff]
          %v1322 = vld [vmem:[#allocation2 + $0x8] sm:$0xff]
          %v1323 = vld [vmem:[#allocation3] sm:$0xff]
          %v1324 = vld [vmem:[#allocation3 + $0x8] sm:$0xff]
          %v1325 = vadd.f32 %v1321, %v1323
          %v1326 = vadd.f32 %v1322, %v1324
          %v1327 = vpack.c.bf16 %v1326, %v1325
          %v1328 = vld [vmem:[%s630] sm:$0xf]
          %v1329 = vld [vmem:[%s630 + $0x4] sm:$0xf]
          %v1330 = vld [vmem:[%s630 + $0x8] sm:$0xf]
          %v1331 = vld [vmem:[%s630 + $0xc] sm:$0xf]
          %v1332 = vld [vmem:[%s630 + $0x10] sm:$0xf]
          %v1333 = vld [vmem:[%s630 + $0x14] sm:$0xf]
          %v1334 = vld [vmem:[%s630 + $0x18] sm:$0xf]
          %v1335 = vld [vmem:[%s630 + $0x1c] sm:$0xf]
          %v1336 = vld [vmem:[%s630 + $0x20] sm:$0xf]
          %v1337 = vld [vmem:[%s630 + $0x24] sm:$0xf]
          %v1338 = vld [vmem:[%s630 + $0x28] sm:$0xf]
          %v1339 = vld [vmem:[%s630 + $0x2c] sm:$0xf]
          %v1340 = vld [vmem:[%s630 + $0x30] sm:$0xf]
          %v1341 = vld [vmem:[%s630 + $0x34] sm:$0xf]
          %v1342 = vld [vmem:[%s630 + $0x38] sm:$0xf]
          %v1343 = vld [vmem:[%s630 + $0x3c] sm:$0xf]
          %v1344 = vld [vmem:[%s633] sm:$0x1]
          %v1346 = vlaneseq
          %v1347 = vshrl.u32 %v1346, 7
          %v1348 = vsub.s32 0, %v1347
          %v1349 = vrot.slane %v1344, %v1348
          %v1367 = vunpack.c.l.b16 %v1328
          %v1368 = vunpack.c.l.b16 %v1329
          %v1369 = vunpack.c.l.b16 %v1330
          %v1370 = vunpack.c.l.b16 %v1331
          %v1371 = vunpack.c.l.b16 %v1332
          %v1372 = vunpack.c.l.b16 %v1333
          %v1373 = vunpack.c.l.b16 %v1334
          %v1374 = vunpack.c.l.b16 %v1335
          %v1375 = vunpack.c.l.b16 %v1336
          %v1376 = vunpack.c.l.b16 %v1337
          %v1377 = vunpack.c.l.b16 %v1338
          %v1378 = vunpack.c.l.b16 %v1339
          %v1379 = vunpack.c.l.b16 %v1340
          %v1380 = vunpack.c.l.b16 %v1341
          %v1381 = vunpack.c.l.b16 %v1342
          %v1382 = vunpack.c.l.b16 %v1343
          %v1383 = vpack.c.b16 %v1368, %v1367
          %v1384 = vpack.c.b16 %v1370, %v1369
          %v1385 = vpack.c.b16 %v1372, %v1371
          %v1386 = vpack.c.b16 %v1374, %v1373
          %v1387 = vpack.c.b16 %v1376, %v1375
          %v1388 = vpack.c.b16 %v1378, %v1377
          %v1389 = vpack.c.b16 %v1380, %v1379
          %v1390 = vpack.c.b16 %v1382, %v1381
          %1399 = vmatprep.subr.bf16.mxu0 0
          %1400 = vmatpush1.bf16.msra.mxu0 %v1390
          %1401 = vmatprep.subr.bf16.mxu0 0
          %1402 = vmatpush1.bf16.msra.mxu0 %v1389
          %1403 = vmatprep.subr.bf16.mxu0 0
          %1404 = vmatpush1.bf16.msra.mxu0 %v1388
          %1405 = vmatprep.subr.bf16.mxu0 0
          %1406 = vmatpush1.bf16.msra.mxu0 %v1387
          %1407 = vmatprep.subr.bf16.mxu0 0
          %1408 = vmatpush1.bf16.msra.mxu0 %v1386
          %1409 = vmatprep.subr.bf16.mxu0 0
          %1410 = vmatpush1.bf16.msra.mxu0 %v1385
          %1411 = vmatprep.subr.bf16.mxu0 0
          %1412 = vmatpush1.bf16.msra.mxu0 %v1384
          %1413 = vmatprep.subr.bf16.mxu0 0
          %1414 = vmatpush1.bf16.msra.mxu0 %v1383
          %1415 = vmatprep.subr.bf16.mxu0 0
          %1416 = vmatpush2.bf16.msra.mxu0 0
          %1417 = vmatprep.subr.bf16.mxu0 0
          %1418 = vmatpush2.bf16.msra.mxu0 0
          %1419 = vmatprep.subr.bf16.mxu0 0
          %1420 = vmatpush2.bf16.msra.mxu0 0
          %1421 = vmatprep.subr.bf16.mxu0 0
          %1422 = vmatpush2.bf16.msra.mxu0 0
          %1423 = vmatprep.subr.bf16.mxu0 0
          %1424 = vmatpush2.bf16.msra.mxu0 0
          %1425 = vmatprep.subr.bf16.mxu0 0
          %1426 = vmatpush2.bf16.msra.mxu0 0
          %1427 = vmatprep.subr.bf16.mxu0 0
          %1428 = vmatpush2.bf16.msra.mxu0 0
          %1429 = vmatprep.subr.bf16.mxu0 0
          %1430 = vmatpush2.bf16.msra.mxu0 0
          %1431 = vmatprep.mubr.bf16.mxu0 0
          %1432 = vmatmul.mubr.bf16.gmra.mxu0 %v1327
          %v1433 = vpop.f32.mrf.mxu0
          %v1434 = vadd.f32 %v1349, %v1433
          %v1435 = vpop.f32.mrf.mxu0
          %v1436 = vpop.f32.mrf.mxu0
          %v1437 = vadd.f32 %v1349, %v1436
          %v1438 = vpop.f32.mrf.mxu0
          %1439 = vdwg.mxu0
          %v1440 = vmax.f32 %v1434, 0.0
          %v1441 = vmax.f32 %v1437, 0.0
          %v1442 = vpack.c.bf16 %v1441, %v1440
          %v1443 = vld [vmem:[%s553] sm:$0xf]
          %v1444 = vld [vmem:[%s553 + $0x4] sm:$0xf]
          %v1445 = vld [vmem:[%s553 + $0x8] sm:$0xf]
          %v1446 = vld [vmem:[%s553 + $0xc] sm:$0xf]
          %v1447 = vld [vmem:[%s553 + $0x10] sm:$0xf]
          %v1448 = vld [vmem:[%s553 + $0x14] sm:$0xf]
          %v1449 = vld [vmem:[%s553 + $0x18] sm:$0xf]
          %v1450 = vld [vmem:[%s553 + $0x1c] sm:$0xf]
          %v1451 = vld [vmem:[%s553 + $0x20] sm:$0xf]
          %v1452 = vld [vmem:[%s553 + $0x24] sm:$0xf]
          %v1453 = vld [vmem:[%s553 + $0x28] sm:$0xf]
          %v1454 = vld [vmem:[%s553 + $0x2c] sm:$0xf]
          %v1455 = vld [vmem:[%s553 + $0x30] sm:$0xf]
          %v1456 = vld [vmem:[%s553 + $0x34] sm:$0xf]
          %v1457 = vld [vmem:[%s553 + $0x38] sm:$0xf]
          %v1458 = vld [vmem:[%s553 + $0x3c] sm:$0xf]
          %v1459 = vld [vmem:[%s636] sm:$0x1]
          %v1461 = vlaneseq
          %v1462 = vshrl.u32 %v1461, 7
          %v1463 = vsub.s32 0, %v1462
          %v1464 = vrot.slane %v1459, %v1463
          %v1482 = vunpack.c.l.b16 %v1443
          %v1483 = vunpack.c.l.b16 %v1444
          %v1484 = vunpack.c.l.b16 %v1445
          %v1485 = vunpack.c.l.b16 %v1446
          %v1486 = vunpack.c.l.b16 %v1447
          %v1487 = vunpack.c.l.b16 %v1448
          %v1488 = vunpack.c.l.b16 %v1449
          %v1489 = vunpack.c.l.b16 %v1450
          %v1490 = vunpack.c.l.b16 %v1451
          %v1491 = vunpack.c.l.b16 %v1452
          %v1492 = vunpack.c.l.b16 %v1453
          %v1493 = vunpack.c.l.b16 %v1454
          %v1494 = vunpack.c.l.b16 %v1455
          %v1495 = vunpack.c.l.b16 %v1456
          %v1496 = vunpack.c.l.b16 %v1457
          %v1497 = vunpack.c.l.b16 %v1458
          %v1498 = vpack.c.b16 %v1483, %v1482
          %v1499 = vpack.c.b16 %v1485, %v1484
          %v1500 = vpack.c.b16 %v1487, %v1486
          %v1501 = vpack.c.b16 %v1489, %v1488
          %v1502 = vpack.c.b16 %v1491, %v1490
          %v1503 = vpack.c.b16 %v1493, %v1492
          %v1504 = vpack.c.b16 %v1495, %v1494
          %v1505 = vpack.c.b16 %v1497, %v1496
          %1514 = vmatprep.subr.bf16.mxu0 0
          %1515 = vmatpush1.bf16.msra.mxu0 %v1505
          %1516 = vmatprep.subr.bf16.mxu0 0
          %1517 = vmatpush1.bf16.msra.mxu0 %v1504
          %1518 = vmatprep.subr.bf16.mxu0 0
          %1519 = vmatpush1.bf16.msra.mxu0 %v1503
          %1520 = vmatprep.subr.bf16.mxu0 0
          %1521 = vmatpush1.bf16.msra.mxu0 %v1502
          %1522 = vmatprep.subr.bf16.mxu0 0
          %1523 = vmatpush1.bf16.msra.mxu0 %v1501
          %1524 = vmatprep.subr.bf16.mxu0 0
          %1525 = vmatpush1.bf16.msra.mxu0 %v1500
          %1526 = vmatprep.subr.bf16.mxu0 0
          %1527 = vmatpush1.bf16.msra.mxu0 %v1499
          %1528 = vmatprep.subr.bf16.mxu0 0
          %1529 = vmatpush1.bf16.msra.mxu0 %v1498
          %1530 = vmatprep.subr.bf16.mxu0 0
          %1531 = vmatpush2.bf16.msra.mxu0 0
          %1532 = vmatprep.subr.bf16.mxu0 0
          %1533 = vmatpush2.bf16.msra.mxu0 0
          %1534 = vmatprep.subr.bf16.mxu0 0
          %1535 = vmatpush2.bf16.msra.mxu0 0
          %1536 = vmatprep.subr.bf16.mxu0 0
          %1537 = vmatpush2.bf16.msra.mxu0 0
          %1538 = vmatprep.subr.bf16.mxu0 0
          %1539 = vmatpush2.bf16.msra.mxu0 0
          %1540 = vmatprep.subr.bf16.mxu0 0
          %1541 = vmatpush2.bf16.msra.mxu0 0
          %1542 = vmatprep.subr.bf16.mxu0 0
          %1543 = vmatpush2.bf16.msra.mxu0 0
          %1544 = vmatprep.subr.bf16.mxu0 0
          %1545 = vmatpush2.bf16.msra.mxu0 0
          %1546 = vmatprep.mubr.bf16.mxu0 0
          %1547 = vmatmul.mubr.bf16.gmra.mxu0 %v1442
          %v1548 = vpop.f32.mrf.mxu0
          %v1549 = vadd.f32 %v1464, %v1548
          %v1550 = vpop.f32.mrf.mxu0
          %v1551 = vpop.f32.mrf.mxu0
          %v1552 = vadd.f32 %v1464, %v1551
          %v1553 = vpop.f32.mrf.mxu0
          %1554 = vdwg.mxu0
          %v1555 = vmax.f32 %v1549, 0.0
          %v1556 = vmax.f32 %v1552, 0.0
          %v1557 = vadd.f32 %v1321, %v1555
          %v1558 = vadd.f32 %v1322, %v1556
          %1559 = vst [vmem:[#allocation2] sm:$0xff] %v1557
          %1560 = vst [vmem:[#allocation2 + $0x8] sm:$0xff] %v1558
        $region108: #{tpu_custom_call.1} parent=75 // pred_fallthru
          _
        %p1561 = scmp.eq.s32.totalorder %s35, 1
        %p1562 = pnand %p1561, %p639
        %p1563 = pneg %p1562
        // Predicated region
        $region109: #{tpu_custom_call.1} parent=75 // pred_check
          _
        $region110: #{tpu_custom_call.1} parent=75 // pred_check_branch
          %1565 = sbr.rel (%p1562) target = $region112
        $region111: #{tpu_custom_call.1} parent=75 // pred_region
          %v1566 = vld [vmem:[#allocation2] sm:$0xff]
          %v1567 = vld [vmem:[#allocation2 + $0x8] sm:$0xff]
          %v1568 = vpack.c.bf16 %v1567, %v1566
          %v1569 = vld [vmem:[#allocation12] sm:$0xf]
          %v1570 = vld [vmem:[#allocation12 + $0x4] sm:$0xf]
          %v1571 = vld [vmem:[#allocation12 + $0x8] sm:$0xf]
          %v1572 = vld [vmem:[#allocation12 + $0xc] sm:$0xf]
          %v1573 = vld [vmem:[#allocation12 + $0x10] sm:$0xf]
          %v1574 = vld [vmem:[#allocation12 + $0x14] sm:$0xf]
          %v1575 = vld [vmem:[#allocation12 + $0x18] sm:$0xf]
          %v1576 = vld [vmem:[#allocation12 + $0x1c] sm:$0xf]
          %v1577 = vld [vmem:[#allocation12 + $0x20] sm:$0xf]
          %v1578 = vld [vmem:[#allocation12 + $0x24] sm:$0xf]
          %v1579 = vld [vmem:[#allocation12 + $0x28] sm:$0xf]
          %v1580 = vld [vmem:[#allocation12 + $0x2c] sm:$0xf]
          %v1581 = vld [vmem:[#allocation12 + $0x30] sm:$0xf]
          %v1582 = vld [vmem:[#allocation12 + $0x34] sm:$0xf]
          %v1583 = vld [vmem:[#allocation12 + $0x38] sm:$0xf]
          %v1584 = vld [vmem:[#allocation12 + $0x3c] sm:$0xf]
          %v1585 = vld [vmem:[%s13] sm:$0x1]
          %v1587 = vlaneseq
          %v1588 = vshrl.u32 %v1587, 7
          %v1589 = vsub.s32 0, %v1588
          %v1590 = vrot.slane %v1585, %v1589
          %v1608 = vunpack.c.l.b16 %v1569
          %v1609 = vunpack.c.l.b16 %v1570
          %v1610 = vunpack.c.l.b16 %v1571
          %v1611 = vunpack.c.l.b16 %v1572
          %v1612 = vunpack.c.l.b16 %v1573
          %v1613 = vunpack.c.l.b16 %v1574
          %v1614 = vunpack.c.l.b16 %v1575
          %v1615 = vunpack.c.l.b16 %v1576
          %v1616 = vunpack.c.l.b16 %v1577
          %v1617 = vunpack.c.l.b16 %v1578
          %v1618 = vunpack.c.l.b16 %v1579
          %v1619 = vunpack.c.l.b16 %v1580
          %v1620 = vunpack.c.l.b16 %v1581
          %v1621 = vunpack.c.l.b16 %v1582
          %v1622 = vunpack.c.l.b16 %v1583
          %v1623 = vunpack.c.l.b16 %v1584
          %v1624 = vpack.c.b16 %v1609, %v1608
          %v1625 = vpack.c.b16 %v1611, %v1610
          %v1626 = vpack.c.b16 %v1613, %v1612
          %v1627 = vpack.c.b16 %v1615, %v1614
          %v1628 = vpack.c.b16 %v1617, %v1616
          %v1629 = vpack.c.b16 %v1619, %v1618
          %v1630 = vpack.c.b16 %v1621, %v1620
          %v1631 = vpack.c.b16 %v1623, %v1622
          %1640 = vmatprep.subr.bf16.mxu0 0
          %1641 = vmatpush1.bf16.msra.mxu0 %v1631
          %1642 = vmatprep.subr.bf16.mxu0 0
          %1643 = vmatpush1.bf16.msra.mxu0 %v1630
          %1644 = vmatprep.subr.bf16.mxu0 0
          %1645 = vmatpush1.bf16.msra.mxu0 %v1629
          %1646 = vmatprep.subr.bf16.mxu0 0
          %1647 = vmatpush1.bf16.msra.mxu0 %v1628
          %1648 = vmatprep.subr.bf16.mxu0 0
          %1649 = vmatpush1.bf16.msra.mxu0 %v1627
          %1650 = vmatprep.subr.bf16.mxu0 0
          %1651 = vmatpush1.bf16.msra.mxu0 %v1626
          %1652 = vmatprep.subr.bf16.mxu0 0
          %1653 = vmatpush1.bf16.msra.mxu0 %v1625
          %1654 = vmatprep.subr.bf16.mxu0 0
          %1655 = vmatpush1.bf16.msra.mxu0 %v1624
          %1656 = vmatprep.subr.bf16.mxu0 0
          %1657 = vmatpush2.bf16.msra.mxu0 0
          %1658 = vmatprep.subr.bf16.mxu0 0
          %1659 = vmatpush2.bf16.msra.mxu0 0
          %1660 = vmatprep.subr.bf16.mxu0 0
          %1661 = vmatpush2.bf16.msra.mxu0 0
          %1662 = vmatprep.subr.bf16.mxu0 0
          %1663 = vmatpush2.bf16.msra.mxu0 0
          %1664 = vmatprep.subr.bf16.mxu0 0
          %1665 = vmatpush2.bf16.msra.mxu0 0
          %1666 = vmatprep.subr.bf16.mxu0 0
          %1667 = vmatpush2.bf16.msra.mxu0 0
          %1668 = vmatprep.subr.bf16.mxu0 0
          %1669 = vmatpush2.bf16.msra.mxu0 0
          %1670 = vmatprep.subr.bf16.mxu0 0
          %1671 = vmatpush2.bf16.msra.mxu0 0
          %1672 = vmatprep.mubr.bf16.mxu0 0
          %1673 = vmatmul.mubr.bf16.gmra.mxu0 %v1568
          %v1674 = vpop.f32.mrf.mxu0
          %v1675 = vadd.f32 %v1590, %v1674
          %v1676 = vpop.f32.mrf.mxu0
          %v1677 = vpop.f32.mrf.mxu0
          %v1678 = vadd.f32 %v1590, %v1677
          %v1679 = vpop.f32.mrf.mxu0
          %1680 = vdwg.mxu0
          %v1681 = vpack.c.bf16 %v1678, %v1675
          %v1683 = vunpack.c.l.b16 %v1681
          %v1684 = vunpack.c.h.b16 %v1681
          %v1685 = vpack.c.b16 %v1683, %v1683
          %v1686 = vpack.c.b16 %v1684, %v1684
          %1689 = vst [vmem:[#allocation13] sm:$0xf] %v1685
          %1690 = vst [vmem:[#allocation13 + $0x4] sm:$0xf] %v1686
        $region112: #{tpu_custom_call.1} parent=75 // pred_fallthru
          _
        // Predicated region
        $region113: #{tpu_custom_call.1} parent=75 // pred_check
          %p1691 = pneg %p385
        $region114: #{tpu_custom_call.1} parent=75 // pred_check_branch
          %1693 = sbr.rel (%p1691) target = $region116
        $region115: #{tpu_custom_call.1} parent=75 // pred_region
          %s1695 = ssub.s32 128, 128
          %1696 = vsyncadd [#allocation6], %s1695
          %s1697 = sshll.u32 [#allocation13], 4
          %s1698 = int_to_ptr.vmem [resolvable:$true] %s1697
          %1703 = dma.vmem_to_hbm [thread:$0]  %s1698, 128, %s14, [#allocation6], 64, 64, 4
        $region116: #{tpu_custom_call.1} parent=75 // pred_fallthru
          _
        // Predicated region
        $region117: #{tpu_custom_call.1} parent=75 // pred_check
          %p1704 = pneg %p385
        $region118: #{tpu_custom_call.1} parent=75 // pred_check_branch
          %1706 = sbr.rel (%p1704) target = $region120
        $region119: #{tpu_custom_call.1} parent=75 // pred_region
          %1707 = dma.done [#allocation6], 128
        $region120: #{tpu_custom_call.1} parent=75 // pred_fallthru
          _
      $region76: #{tpu_custom_call.1} parent=5 // pred_fallthru
        _
      %p1708 = scmp.le.s32.totalorder 2, %s26
      // Predicated region
      $region121: #{tpu_custom_call.1} parent=5 // pred_check
        %p1709 = pneg %p1708
      $region122: #{tpu_custom_call.1} parent=5 // pred_check_branch
        %1711 = sbr.rel (%p1709) target = $region124
      $region123: #{tpu_custom_call.1} parent=5 // pred_region
        %s1712 = ssub.s32 %s26, 2
      $region124: #{tpu_custom_call.1} parent=5 // pred_fallthru
        _
    $region6: #{tpu_custom_call.1} parent=1 // loop_footer
      %s30 = sadd.s32 1, %s26
    $region7: #{tpu_custom_call.1} parent=1 // loop_footer_branch
      %25 = sbr.rel target = $region3
    $region8: #{tpu_custom_call.1} parent=1 // loop_exit
      _
    %1713 = vsyncpa [#allocation5], 1
    %s1714 = scalar_lea.sflag [#allocation5], 1
    %1715 = vsyncpa %s1714, 1
    %1716 = vsyncpa [#allocation8], 1
    %1717 = vsyncpa [#allocation11], 1
    %s1718 = scalar_lea.sflag [#allocation11], 1
    %1719 = vsyncpa %s1718, 1
    %1720 = vsyncpa [#allocation6], 1
    %s1721 = scalar_lea.sflag [#allocation6], 1
    %1722 = vsyncpa %s1721, 1

</llo_original>
